<compile_context>
chip_gen: v6e
topology: v6e:2x2x1
jax: 0.10.0
libtpu: 0.0.40
codegen_flags: <defaults>
</compile_context>

<pallas_src>
import jax
import jax.numpy as jnp
from jax import lax
from jax.experimental import pallas as pl
from jax.experimental.pallas import tpu as pltpu


def bilstm_kernel(x_ref, wih_ref, whh_ref, b_ref, hs_ref, gx_scr):
    """Fused bidirectional LSTM over one batch tile.

    x_ref   : (T, Bt, E)   bf16  time-major embedded inputs
    wih_ref : (E, 8H)      bf16  [Wih_f | Wih_b], gate order (i,f,o,g) per dir
    whh_ref : (2H, 8H)     bf16  block-diag [[Whh_f, 0], [0, Whh_b]]
    b_ref   : (1, 8H)      f32   [b_f | b_b]  (b_ih + b_hh per direction)
    hs_ref  : (T, Bt, 2H)  f32   output hidden slab [h_fwd | h_bwd]
    gx_scr  : (T, Bt, 8H)  f32   hoisted input-projection scratch
    """
    T, Bt, _ = x_ref.shape
    H2 = whh_ref.shape[0]
    H = H2 // 2
    H4 = 4 * H

    # Hoisted input projection: one MXU GEMM, M = T*Bt, N = 8H (both directions
    # fused along N), bias folded in once (no per-step broadcast+add).
    gx_scr[...] = lax.dot_general(
        x_ref[...], wih_ref[...], (((2,), (0,)), ((), ())),
        preferred_element_type=jnp.float32) + b_ref[...]

    def cell(g, c):
        # Gate layout (reordered in wrapper): [i | f | o | g], each H wide.
        # One sigmoid over 3H + one tanh over H per direction.
        sig = jax.nn.sigmoid(g[:, 0:3 * H])
        g_in = jnp.tanh(g[:, 3 * H:4 * H])
        i_g = sig[:, 0:H]
        f_g = sig[:, H:2 * H]
        o_g = sig[:, 2 * H:3 * H]
        c_new = f_g * c + i_g * g_in
        h_new = o_g * jnp.tanh(c_new)
        return h_new, c_new

    # Interleaved forward (t = i) / backward (t = T-1-i) recurrences: one
    # block-diagonal matmul produces both directions' recurrent gates.
    def step(i, carry):
        h_cat, c_f, c_b = carry                      # h_cat bf16 (Bt, 2H)
        tb = T - 1 - i

        gmm = jnp.dot(h_cat, whh_ref[...],
                      preferred_element_type=jnp.float32)      # (Bt, 8H) f32
        g_f = gx_scr[i, :, 0:H4] + gmm[:, 0:H4]
        g_b = gx_scr[tb, :, H4:2 * H4] + gmm[:, H4:2 * H4]

        h_f, c_f = cell(g_f, c_f)
        h_b, c_b = cell(g_b, c_b)

        # Write both directions straight into the fused slab — no output concat.
        hs_ref[i, :, 0:H] = h_f
        hs_ref[tb, :, H:2 * H] = h_b

        h_cat = jnp.concatenate([h_f, h_b], axis=1).astype(whh_ref.dtype)
        return (h_cat, c_f, c_b)

    h0 = jnp.zeros((Bt, 2 * H), whh_ref.dtype)
    c0 = jnp.zeros((Bt, H), jnp.float32)
    lax.fori_loop(0, T, step, (h0, c0, c0), unroll=True)


def _reorder_gates(w, H):
    """PyTorch gate order (i,f,g,o) -> kernel order (i,f,o,g) along last axis."""
    perm = jnp.concatenate([jnp.arange(0, 2 * H),
                            jnp.arange(3 * H, 4 * H),
                            jnp.arange(2 * H, 3 * H)])
    return w[..., perm]


def bilstm_forward(tokens, params):
    """tokens: (B, T) int32 -> logits (B, T, num_classes). Dropout = identity (eval)."""
    # TODO(synk): embedding gather stays in plain JAX (data-dependent gather).
    # Gather directly into time-major layout (no separate transpose pass).
    x = params["embedding"][tokens.T].astype(jnp.bfloat16)      # (T, B, E)
    T, B, E = x.shape
    H = params["whh_f"].shape[0]

    # Wrapper-side weight prep (runs once under jit, tiny):
    #   * reorder gate columns (i,f,g,o) -> (i,f,o,g)
    #   * fuse both directions' input projections along N (N = 8H)
    #   * build the block-diagonal recurrent weight (2H, 8H)
    wih_f = _reorder_gates(params["wih_f"], H)
    wih_b = _reorder_gates(params["wih_b"], H)
    whh_f = _reorder_gates(params["whh_f"], H)
    whh_b = _reorder_gates(params["whh_b"], H)
    b_f = _reorder_gates(params["b_f"], H)
    b_b = _reorder_gates(params["b_b"], H)

    wih = jnp.concatenate([wih_f, wih_b], axis=1).astype(jnp.bfloat16)   # (E, 8H)
    whh_blk = jnp.zeros((2 * H, 8 * H), jnp.float32)
    whh_blk = whh_blk.at[:H, :4 * H].set(whh_f).at[H:, 4 * H:].set(whh_b)
    whh_blk = whh_blk.astype(jnp.bfloat16)                               # (2H, 8H)
    b = jnp.concatenate([b_f, b_b], axis=1)                              # (1, 8H) f32

    # Batch tiling (parallel grid axis -> megacore sharding). For tiny B
    # (demo: B=2) the tile is the full batch and the grid is trivial.
    b_tile = B
    for cand in (64, 32, 16, 8):
        if B % cand == 0:
            b_tile = cand
            break
    grid = (B // b_tile,)

    flops = int(2 * T * B * E * 8 * H          # hoisted input projection
                + 2 * T * B * 2 * H * 8 * H    # block-diag recurrent matmul
                + 12 * T * B * 2 * H)          # cell elementwise updates
    transcendentals = int(5 * T * B * 2 * H)   # 3 sigmoid + 2 tanh per dir/step
    bytes_accessed = int(x.size * 2 + wih.size * 2 + whh_blk.size * 2
                         + b.size * 4 + T * B * 2 * H * 4)

    footprint = (T * b_tile * E * 2 + E * 8 * H * 2 + 2 * H * 8 * H * 2
                 + 8 * H * 4 + T * b_tile * 8 * H * 4 + T * b_tile * 2 * H * 4)
    vmem_limit = int(min(64 * 2 ** 20, max(16 * 2 ** 20, 4 * footprint)))

    hs = pl.pallas_call(
        bilstm_kernel,
        out_shape=jax.ShapeDtypeStruct((T, B, 2 * H), jnp.float32),
        grid=grid,
        in_specs=[
            pl.BlockSpec((T, b_tile, E), lambda bb: (0, bb, 0)),
            pl.BlockSpec((E, 8 * H), lambda bb: (0, 0)),
            pl.BlockSpec((2 * H, 8 * H), lambda bb: (0, 0)),
            pl.BlockSpec((1, 8 * H), lambda bb: (0, 0)),
        ],
        out_specs=pl.BlockSpec((T, b_tile, 2 * H), lambda bb: (0, bb, 0)),
        scratch_shapes=[pltpu.VMEM((T, b_tile, 8 * H), jnp.float32)],
        compiler_params=pltpu.CompilerParams(
            dimension_semantics=("parallel",),
            vmem_limit_bytes=vmem_limit),
        cost_estimate=pl.CostEstimate(flops=flops,
                                      transcendentals=transcendentals,
                                      bytes_accessed=bytes_accessed),
    )(x, wih, whh_blk, b)

    # Final 2H -> C (=4) linear kept in XLA (lane-masked / MXU-hostile in-kernel);
    # the batch-first transpose folds into this tiny einsum.
    return jnp.einsum("tbh,hc->btc", hs, params["wfc"]) + params["bfc"]


def make_params(key, vocab_size, embedding_size, hidden_size, num_classes):
    ks = jax.random.split(key, 12)
    E, H, C = embedding_size, hidden_size, num_classes
    s = 1.0 / jnp.sqrt(H)

    def u(k, shape):
        return jax.random.uniform(k, shape, jnp.float32, -s, s)

    # PyTorch LSTM params: weight_ih (4H,E), weight_hh (4H,H), biases (4H,)
    # gate order i,f,g,o.  Stored pre-transposed for x @ W.
    wih_f = u(ks[0], (4 * H, E)).T
    whh_f = u(ks[1], (4 * H, H)).T
    b_f = (u(ks[2], (4 * H,)) + u(ks[3], (4 * H,)))[None, :]      # b_ih + b_hh
    wih_b = u(ks[4], (4 * H, E)).T
    whh_b = u(ks[5], (4 * H, H)).T
    b_b = (u(ks[6], (4 * H,)) + u(ks[7], (4 * H,)))[None, :]
    # nn.Linear(2H, C): weight (C, 2H), bias (C,)
    sfc = 1.0 / jnp.sqrt(2 * H)
    wfc = jax.random.uniform(ks[8], (C, 2 * H), jnp.float32, -sfc, sfc).T
    bfc = jax.random.uniform(ks[9], (C,), jnp.float32, -sfc, sfc)[None, :]
    embedding = jax.random.normal(ks[10], (vocab_size + 1, E), jnp.float32)
    return dict(embedding=embedding,
                wih_f=wih_f, whh_f=whh_f, b_f=b_f,
                wih_b=wih_b, whh_b=whh_b, b_b=b_b,
                wfc=wfc, bfc=bfc)


def bilstm_reference(tokens, params):
    """Pure-JAX reference with the same precision policy (bf16 matmul operands,
    f32 accumulation / cell math) and PyTorch gate order, for sanity checking."""
    emb = params["embedding"][tokens].astype(jnp.float32)   # (B, T, E)
    B, T, _ = emb.shape
    H = params["whh_f"].shape[0]

    def run_dir(x_tm, wih, whh, b):
        wih16 = wih.astype(jnp.bfloat16)
        whh16 = whh.astype(jnp.bfloat16)

        def step(carry, x_t):
            h, c = carry
            g = (jnp.dot(x_t.astype(jnp.bfloat16), wih16,
                         preferred_element_type=jnp.float32)
                 + jnp.dot(h.astype(jnp.bfloat16), whh16,
                           preferred_element_type=jnp.float32)
                 + b)
            i_g = jax.nn.sigmoid(g[:, 0 * H:1 * H])
            f_g = jax.nn.sigmoid(g[:, 1 * H:2 * H])
            g_g = jnp.tanh(g[:, 2 * H:3 * H])
            o_g = jax.nn.sigmoid(g[:, 3 * H:4 * H])
            c = f_g * c + i_g * g_g
            h = o_g * jnp.tanh(c)
            return (h, c), h

        init = (jnp.zeros((B, H), jnp.float32), jnp.zeros((B, H), jnp.float32))
        _, hs = lax.scan(step, init, x_tm)
        return hs                                            # (T, B, H)

    x_tm = jnp.transpose(emb, (1, 0, 2))
    hf = run_dir(x_tm, params["wih_f"], params["whh_f"], params["b_f"])
    hb = run_dir(x_tm[::-1], params["wih_b"], params["whh_b"], params["b_b"])[::-1]
    hs = jnp.concatenate([hf, hb], axis=-1)                  # (T, B, 2H)
    return jnp.einsum("tbh,hc->btc", hs, params["wfc"]) + params["bfc"]


if __name__ == "__main__":
    vocab_size, embedding_size, hidden_size, num_classes = 50, 32, 32, 4
    B, T = 2, 8

    key = jax.random.PRNGKey(0)
    k_tok, k_par = jax.random.split(key)
    tokens = jax.random.randint(k_tok, (B, T), 0, vocab_size + 1, dtype=jnp.int32)
    params = make_params(k_par, vocab_size, embedding_size, hidden_size, num_classes)

    fwd = jax.jit(bilstm_forward)
    out = jax.block_until_ready(fwd(tokens, params))
    ref = jax.block_until_ready(bilstm_reference(tokens, params))

    assert out.shape == (B, T, num_classes), out.shape
    assert bool(jnp.all(jnp.isfinite(out)))
    assert jnp.allclose(out, ref, rtol=5e-3, atol=5e-3), float(jnp.max(jnp.abs(out - ref)))
    print("KERNEL_OK")
</pallas_src>

<mosaic_0001>
module attributes {stable_mosaic.version = 11 : i64} {
  func.func @bilstm_kernel(%arg0: i32, %arg1: memref<8x2x32xbf16, #tpu.memory_space<vmem>>, %arg2: memref<32x256xbf16, #tpu.memory_space<vmem>>, %arg3: memref<64x256xbf16, #tpu.memory_space<vmem>>, %arg4: memref<1x256xf32, #tpu.memory_space<vmem>>, %arg5: memref<8x2x64xf32, #tpu.memory_space<vmem>>, %arg6: memref<8x2x256xf32, #tpu.memory_space<vmem>>) attributes {dimension_semantics = [#tpu.dimension_semantics<parallel>], iteration_bounds = array<i64: 1>, scalar_prefetch = 0 : i64, scratch_operands = 1 : i64, tpu.core_type = #tpu.core_type<tc>, window_params = [{transform_indices = @transform_0, window_bounds = array<i64: 8, 2, 32>}, {pipeline_mode = #tpu.pipeline_mode<synchronous>, transform_indices = @transform_1, window_bounds = array<i64: 32, 256>}, {pipeline_mode = #tpu.pipeline_mode<synchronous>, transform_indices = @transform_2, window_bounds = array<i64: 64, 256>}, {pipeline_mode = #tpu.pipeline_mode<synchronous>, transform_indices = @transform_3, window_bounds = array<i64: 1, 256>}, {transform_indices = @transform_4, window_bounds = array<i64: 8, 2, 64>}]} {
    %c0 = arith.constant 0 : index
    %c0_0 = arith.constant 0 : index
    %c0_1 = arith.constant 0 : index
    %0 = vector.load %arg1[%c0, %c0_0, %c0_1] : memref<8x2x32xbf16, #tpu.memory_space<vmem>>, vector<8x2x32xbf16>
    %c0_2 = arith.constant 0 : index
    %c0_3 = arith.constant 0 : index
    %1 = vector.load %arg2[%c0_2, %c0_3] : memref<32x256xbf16, #tpu.memory_space<vmem>>, vector<32x256xbf16>
    %cst = arith.constant dense<0.000000e+00> : vector<8x2x256xf32>
    %2 = tpu.matmul %0, %1, %cst {dimension_numbers = #tpu.dot_dimension_numbers<[2], [0], [0, 1], [1], [0, 0, 0, 1, 1, 1], [], []>} : vector<8x2x32xbf16>, vector<32x256xbf16>, vector<8x2x256xf32> -> vector<8x2x256xf32>
    %c0_4 = arith.constant 0 : index
    %c0_5 = arith.constant 0 : index
    %3 = vector.load %arg4[%c0_4, %c0_5] : memref<1x256xf32, #tpu.memory_space<vmem>>, vector<1x256xf32>
    %4 = vector.shape_cast %3 : vector<1x256xf32> to vector<1x1x256xf32>
    %5 = vector.broadcast %4 : vector<1x1x256xf32> to vector<8x2x256xf32>
    %6 = arith.addf %2, %5 : vector<8x2x256xf32>
    %c0_6 = arith.constant 0 : index
    %c0_7 = arith.constant 0 : index
    %c0_8 = arith.constant 0 : index
    %7 = vector.load %arg6[%c0_6, %c0_7, %c0_8] : memref<8x2x256xf32, #tpu.memory_space<vmem>>, vector<8x2x256xf32>
    tpu.vector_store %arg6[%c0_6, %c0_7, %c0_8], %6 {strides = array<i32>} : memref<8x2x256xf32, #tpu.memory_space<vmem>>, vector<8x2x256xf32>,
    %cst_9 = arith.constant 0.000000e+00 : bf16
    %8 = vector.broadcast %cst_9 : bf16 to vector<2x64xbf16>
    %cst_10 = arith.constant 0.000000e+00 : f32
    %9 = vector.broadcast %cst_10 : f32 to vector<2x32xf32>
    %c0_i32 = arith.constant 0 : i32
    %c7_i32 = arith.constant 7 : i32
    %10 = arith.subi %c7_i32, %c0_i32 : i32
    %c0_11 = arith.constant 0 : index
    %c0_12 = arith.constant 0 : index
    %11 = vector.load %arg3[%c0_11, %c0_12] : memref<64x256xbf16, #tpu.memory_space<vmem>>, vector<64x256xbf16>
    %cst_13 = arith.constant dense<0.000000e+00> : vector<2x256xf32>
    %12 = tpu.matmul %8, %11, %cst_13 {dimension_numbers = #tpu.dot_dimension_numbers<[1], [0], [0], [1], [0, 0, 1, 1], [], []>} : vector<2x64xbf16>, vector<64x256xbf16>, vector<2x256xf32> -> vector<2x256xf32>
    %13 = arith.index_cast %c0_i32 : i32 to index
    %c0_14 = arith.constant 0 : index
    %c0_15 = arith.constant 0 : index
    %14 = vector.load %arg6[%13, %c0_14, %c0_15] : memref<8x2x256xf32, #tpu.memory_space<vmem>>, vector<1x2x128xf32>
    %15 = vector.shape_cast %14 : vector<1x2x128xf32> to vector<2x128xf32>
    %16 = vector.extract_strided_slice %12 {offsets = [0, 0], sizes = [2, 128], strides = [1, 1]} : vector<2x256xf32> to vector<2x128xf32>
    %17 = arith.addf %15, %16 : vector<2x128xf32>
    %18 = arith.index_cast %10 : i32 to index
    %c0_16 = arith.constant 0 : index
    %c128 = arith.constant 128 : index
    %19 = vector.load %arg6[%18, %c0_16, %c128] : memref<8x2x256xf32, #tpu.memory_space<vmem>>, vector<1x2x128xf32>
    %20 = vector.shape_cast %19 : vector<1x2x128xf32> to vector<2x128xf32>
    %21 = vector.extract_strided_slice %12 {offsets = [0, 128], sizes = [2, 128], strides = [1, 1]} : vector<2x256xf32> to vector<2x128xf32>
    %22 = arith.addf %20, %21 : vector<2x128xf32>
    %23 = vector.extract_strided_slice %17 {offsets = [0, 0], sizes = [2, 96], strides = [1, 1]} : vector<2x128xf32> to vector<2x96xf32>
    %24 = arith.negf %23 : vector<2x96xf32>
    %25 = math.exp %24 : vector<2x96xf32>
    %cst_17 = arith.constant 1.000000e+00 : f32
    %26 = vector.broadcast %cst_17 : f32 to vector<2x96xf32>
    %27 = arith.addf %26, %25 : vector<2x96xf32>
    %28 = arith.divf %26, %27 : vector<2x96xf32>
    %29 = vector.extract_strided_slice %17 {offsets = [0, 96], sizes = [2, 32], strides = [1, 1]} : vector<2x128xf32> to vector<2x32xf32>
    %30 = math.tanh %29 : vector<2x32xf32>
    %31 = vector.extract_strided_slice %28 {offsets = [0, 0], sizes = [2, 32], strides = [1, 1]} : vector<2x96xf32> to vector<2x32xf32>
    %32 = vector.extract_strided_slice %28 {offsets = [0, 32], sizes = [2, 32], strides = [1, 1]} : vector<2x96xf32> to vector<2x32xf32>
    %33 = vector.extract_strided_slice %28 {offsets = [0, 64], sizes = [2, 32], strides = [1, 1]} : vector<2x96xf32> to vector<2x32xf32>
    %34 = arith.mulf %32, %9 : vector<2x32xf32>
    %35 = arith.mulf %31, %30 : vector<2x32xf32>
    %36 = arith.addf %34, %35 : vector<2x32xf32>
    %37 = math.tanh %36 : vector<2x32xf32>
    %38 = arith.mulf %33, %37 : vector<2x32xf32>
    %39 = vector.extract_strided_slice %22 {offsets = [0, 0], sizes = [2, 96], strides = [1, 1]} : vector<2x128xf32> to vector<2x96xf32>
    %40 = arith.negf %39 : vector<2x96xf32>
    %41 = math.exp %40 : vector<2x96xf32>
    %cst_18 = arith.constant 1.000000e+00 : f32
    %42 = vector.broadcast %cst_18 : f32 to vector<2x96xf32>
    %43 = arith.addf %42, %41 : vector<2x96xf32>
    %44 = arith.divf %42, %43 : vector<2x96xf32>
    %45 = vector.extract_strided_slice %22 {offsets = [0, 96], sizes = [2, 32], strides = [1, 1]} : vector<2x128xf32> to vector<2x32xf32>
    %46 = math.tanh %45 : vector<2x32xf32>
    %47 = vector.extract_strided_slice %44 {offsets = [0, 0], sizes = [2, 32], strides = [1, 1]} : vector<2x96xf32> to vector<2x32xf32>
    %48 = vector.extract_strided_slice %44 {offsets = [0, 32], sizes = [2, 32], strides = [1, 1]} : vector<2x96xf32> to vector<2x32xf32>
    %49 = vector.extract_strided_slice %44 {offsets = [0, 64], sizes = [2, 32], strides = [1, 1]} : vector<2x96xf32> to vector<2x32xf32>
    %50 = arith.mulf %48, %9 : vector<2x32xf32>
    %51 = arith.mulf %47, %46 : vector<2x32xf32>
    %52 = arith.addf %50, %51 : vector<2x32xf32>
    %53 = math.tanh %52 : vector<2x32xf32>
    %54 = arith.mulf %49, %53 : vector<2x32xf32>
    %55 = arith.index_cast %c0_i32 : i32 to index
    %c0_19 = arith.constant 0 : index
    %c0_20 = arith.constant 0 : index
    %56 = vector.load %arg5[%55, %c0_19, %c0_20] : memref<8x2x64xf32, #tpu.memory_space<vmem>>, vector<1x2x32xf32>
    %57 = vector.shape_cast %56 : vector<1x2x32xf32> to vector<2x32xf32>
    %58 = vector.shape_cast %38 : vector<2x32xf32> to vector<1x2x32xf32>
    tpu.vector_store %arg5[%55, %c0_19, %c0_20], %58 {strides = array<i32>} : memref<8x2x64xf32, #tpu.memory_space<vmem>>, vector<1x2x32xf32>,
    %59 = arith.index_cast %10 : i32 to index
    %c0_21 = arith.constant 0 : index
    %c32 = arith.constant 32 : index
    %60 = vector.load %arg5[%59, %c0_21, %c32] : memref<8x2x64xf32, #tpu.memory_space<vmem>>, vector<1x2x32xf32>
    %61 = vector.shape_cast %60 : vector<1x2x32xf32> to vector<2x32xf32>
    %62 = vector.shape_cast %54 : vector<2x32xf32> to vector<1x2x32xf32>
    tpu.vector_store %arg5[%59, %c0_21, %c32], %62 {strides = array<i32>} : memref<8x2x64xf32, #tpu.memory_space<vmem>>, vector<1x2x32xf32>,
    %63 = tpu.concatenate %38, %54 in 1 : vector<2x32xf32>, vector<2x32xf32> -> vector<2x64xf32>
    %64 = arith.truncf %63 : vector<2x64xf32> to vector<2x64xbf16>
    %c1_i32 = arith.constant 1 : i32
    %c7_i32_22 = arith.constant 7 : i32
    %65 = arith.subi %c7_i32_22, %c1_i32 : i32
    %c0_23 = arith.constant 0 : index
    %c0_24 = arith.constant 0 : index
    %66 = vector.load %arg3[%c0_23, %c0_24] : memref<64x256xbf16, #tpu.memory_space<vmem>>, vector<64x256xbf16>
    %cst_25 = arith.constant dense<0.000000e+00> : vector<2x256xf32>
    %67 = tpu.matmul %64, %66, %cst_25 {dimension_numbers = #tpu.dot_dimension_numbers<[1], [0], [0], [1], [0, 0, 1, 1], [], []>} : vector<2x64xbf16>, vector<64x256xbf16>, vector<2x256xf32> -> vector<2x256xf32>
    %68 = arith.index_cast %c1_i32 : i32 to index
    %c0_26 = arith.constant 0 : index
    %c0_27 = arith.constant 0 : index
    %69 = vector.load %arg6[%68, %c0_26, %c0_27] : memref<8x2x256xf32, #tpu.memory_space<vmem>>, vector<1x2x128xf32>
    %70 = vector.shape_cast %69 : vector<1x2x128xf32> to vector<2x128xf32>
    %71 = vector.extract_strided_slice %67 {offsets = [0, 0], sizes = [2, 128], strides = [1, 1]} : vector<2x256xf32> to vector<2x128xf32>
    %72 = arith.addf %70, %71 : vector<2x128xf32>
    %73 = arith.index_cast %65 : i32 to index
    %c0_28 = arith.constant 0 : index
    %c128_29 = arith.constant 128 : index
    %74 = vector.load %arg6[%73, %c0_28, %c128_29] : memref<8x2x256xf32, #tpu.memory_space<vmem>>, vector<1x2x128xf32>
    %75 = vector.shape_cast %74 : vector<1x2x128xf32> to vector<2x128xf32>
    %76 = vector.extract_strided_slice %67 {offsets = [0, 128], sizes = [2, 128], strides = [1, 1]} : vector<2x256xf32> to vector<2x128xf32>
    %77 = arith.addf %75, %76 : vector<2x128xf32>
    %78 = vector.extract_strided_slice %72 {offsets = [0, 0], sizes = [2, 96], strides = [1, 1]} : vector<2x128xf32> to vector<2x96xf32>
    %79 = arith.negf %78 : vector<2x96xf32>
    %80 = math.exp %79 : vector<2x96xf32>
    %cst_30 = arith.constant 1.000000e+00 : f32
    %81 = vector.broadcast %cst_30 : f32 to vector<2x96xf32>
    %82 = arith.addf %81, %80 : vector<2x96xf32>
    %83 = arith.divf %81, %82 : vector<2x96xf32>
    %84 = vector.extract_strided_slice %72 {offsets = [0, 96], sizes = [2, 32], strides = [1, 1]} : vector<2x128xf32> to vector<2x32xf32>
    %85 = math.tanh %84 : vector<2x32xf32>
    %86 = vector.extract_strided_slice %83 {offsets = [0, 0], sizes = [2, 32], strides = [1, 1]} : vector<2x96xf32> to vector<2x32xf32>
    %87 = vector.extract_strided_slice %83 {offsets = [0, 32], sizes = [2, 32], strides = [1, 1]} : vector<2x96xf32> to vector<2x32xf32>
    %88 = vector.extract_strided_slice %83 {offsets = [0, 64], sizes = [2, 32], strides = [1, 1]} : vector<2x96xf32> to vector<2x32xf32>
    %89 = arith.mulf %87, %36 : vector<2x32xf32>
    %90 = arith.mulf %86, %85 : vector<2x32xf32>
    %91 = arith.addf %89, %90 : vector<2x32xf32>
    %92 = math.tanh %91 : vector<2x32xf32>
    %93 = arith.mulf %88, %92 : vector<2x32xf32>
    %94 = vector.extract_strided_slice %77 {offsets = [0, 0], sizes = [2, 96], strides = [1, 1]} : vector<2x128xf32> to vector<2x96xf32>
    %95 = arith.negf %94 : vector<2x96xf32>
    %96 = math.exp %95 : vector<2x96xf32>
    %cst_31 = arith.constant 1.000000e+00 : f32
    %97 = vector.broadcast %cst_31 : f32 to vector<2x96xf32>
    %98 = arith.addf %97, %96 : vector<2x96xf32>
    %99 = arith.divf %97, %98 : vector<2x96xf32>
    %100 = vector.extract_strided_slice %77 {offsets = [0, 96], sizes = [2, 32], strides = [1, 1]} : vector<2x128xf32> to vector<2x32xf32>
    %101 = math.tanh %100 : vector<2x32xf32>
    %102 = vector.extract_strided_slice %99 {offsets = [0, 0], sizes = [2, 32], strides = [1, 1]} : vector<2x96xf32> to vector<2x32xf32>
    %103 = vector.extract_strided_slice %99 {offsets = [0, 32], sizes = [2, 32], strides = [1, 1]} : vector<2x96xf32> to vector<2x32xf32>
    %104 = vector.extract_strided_slice %99 {offsets = [0, 64], sizes = [2, 32], strides = [1, 1]} : vector<2x96xf32> to vector<2x32xf32>
    %105 = arith.mulf %103, %52 : vector<2x32xf32>
    %106 = arith.mulf %102, %101 : vector<2x32xf32>
    %107 = arith.addf %105, %106 : vector<2x32xf32>
    %108 = math.tanh %107 : vector<2x32xf32>
    %109 = arith.mulf %104, %108 : vector<2x32xf32>
    %110 = arith.index_cast %c1_i32 : i32 to index
    %c0_32 = arith.constant 0 : index
    %c0_33 = arith.constant 0 : index
    %111 = vector.load %arg5[%110, %c0_32, %c0_33] : memref<8x2x64xf32, #tpu.memory_space<vmem>>, vector<1x2x32xf32>
    %112 = vector.shape_cast %111 : vector<1x2x32xf32> to vector<2x32xf32>
    %113 = vector.shape_cast %93 : vector<2x32xf32> to vector<1x2x32xf32>
    tpu.vector_store %arg5[%110, %c0_32, %c0_33], %113 {strides = array<i32>} : memref<8x2x64xf32, #tpu.memory_space<vmem>>, vector<1x2x32xf32>,
    %114 = arith.index_cast %65 : i32 to index
    %c0_34 = arith.constant 0 : index
    %c32_35 = arith.constant 32 : index
    %115 = vector.load %arg5[%114, %c0_34, %c32_35] : memref<8x2x64xf32, #tpu.memory_space<vmem>>, vector<1x2x32xf32>
    %116 = vector.shape_cast %115 : vector<1x2x32xf32> to vector<2x32xf32>
    %117 = vector.shape_cast %109 : vector<2x32xf32> to vector<1x2x32xf32>
    tpu.vector_store %arg5[%114, %c0_34, %c32_35], %117 {strides = array<i32>} : memref<8x2x64xf32, #tpu.memory_space<vmem>>, vector<1x2x32xf32>,
    %118 = tpu.concatenate %93, %109 in 1 : vector<2x32xf32>, vector<2x32xf32> -> vector<2x64xf32>
    %119 = arith.truncf %118 : vector<2x64xf32> to vector<2x64xbf16>
    %c2_i32 = arith.constant 2 : i32
    %c7_i32_36 = arith.constant 7 : i32
    %120 = arith.subi %c7_i32_36, %c2_i32 : i32
    %c0_37 = arith.constant 0 : index
    %c0_38 = arith.constant 0 : index
    %121 = vector.load %arg3[%c0_37, %c0_38] : memref<64x256xbf16, #tpu.memory_space<vmem>>, vector<64x256xbf16>
    %cst_39 = arith.constant dense<0.000000e+00> : vector<2x256xf32>
    %122 = tpu.matmul %119, %121, %cst_39 {dimension_numbers = #tpu.dot_dimension_numbers<[1], [0], [0], [1], [0, 0, 1, 1], [], []>} : vector<2x64xbf16>, vector<64x256xbf16>, vector<2x256xf32> -> vector<2x256xf32>
    %123 = arith.index_cast %c2_i32 : i32 to index
    %c0_40 = arith.constant 0 : index
    %c0_41 = arith.constant 0 : index
    %124 = vector.load %arg6[%123, %c0_40, %c0_41] : memref<8x2x256xf32, #tpu.memory_space<vmem>>, vector<1x2x128xf32>
    %125 = vector.shape_cast %124 : vector<1x2x128xf32> to vector<2x128xf32>
    %126 = vector.extract_strided_slice %122 {offsets = [0, 0], sizes = [2, 128], strides = [1, 1]} : vector<2x256xf32> to vector<2x128xf32>
    %127 = arith.addf %125, %126 : vector<2x128xf32>
    %128 = arith.index_cast %120 : i32 to index
    %c0_42 = arith.constant 0 : index
    %c128_43 = arith.constant 128 : index
    %129 = vector.load %arg6[%128, %c0_42, %c128_43] : memref<8x2x256xf32, #tpu.memory_space<vmem>>, vector<1x2x128xf32>
    %130 = vector.shape_cast %129 : vector<1x2x128xf32> to vector<2x128xf32>
    %131 = vector.extract_strided_slice %122 {offsets = [0, 128], sizes = [2, 128], strides = [1, 1]} : vector<2x256xf32> to vector<2x128xf32>
    %132 = arith.addf %130, %131 : vector<2x128xf32>
    %133 = vector.extract_strided_slice %127 {offsets = [0, 0], sizes = [2, 96], strides = [1, 1]} : vector<2x128xf32> to vector<2x96xf32>
    %134 = arith.negf %133 : vector<2x96xf32>
    %135 = math.exp %134 : vector<2x96xf32>
    %cst_44 = arith.constant 1.000000e+00 : f32
    %136 = vector.broadcast %cst_44 : f32 to vector<2x96xf32>
    %137 = arith.addf %136, %135 : vector<2x96xf32>
    %138 = arith.divf %136, %137 : vector<2x96xf32>
    %139 = vector.extract_strided_slice %127 {offsets = [0, 96], sizes = [2, 32], strides = [1, 1]} : vector<2x128xf32> to vector<2x32xf32>
    %140 = math.tanh %139 : vector<2x32xf32>
    %141 = vector.extract_strided_slice %138 {offsets = [0, 0], sizes = [2, 32], strides = [1, 1]} : vector<2x96xf32> to vector<2x32xf32>
    %142 = vector.extract_strided_slice %138 {offsets = [0, 32], sizes = [2, 32], strides = [1, 1]} : vector<2x96xf32> to vector<2x32xf32>
    %143 = vector.extract_strided_slice %138 {offsets = [0, 64], sizes = [2, 32], strides = [1, 1]} : vector<2x96xf32> to vector<2x32xf32>
    %144 = arith.mulf %142, %91 : vector<2x32xf32>
    %145 = arith.mulf %141, %140 : vector<2x32xf32>
    %146 = arith.addf %144, %145 : vector<2x32xf32>
    %147 = math.tanh %146 : vector<2x32xf32>
    %148 = arith.mulf %143, %147 : vector<2x32xf32>
    %149 = vector.extract_strided_slice %132 {offsets = [0, 0], sizes = [2, 96], strides = [1, 1]} : vector<2x128xf32> to vector<2x96xf32>
    %150 = arith.negf %149 : vector<2x96xf32>
    %151 = math.exp %150 : vector<2x96xf32>
    %cst_45 = arith.constant 1.000000e+00 : f32
    %152 = vector.broadcast %cst_45 : f32 to vector<2x96xf32>
    %153 = arith.addf %152, %151 : vector<2x96xf32>
    %154 = arith.divf %152, %153 : vector<2x96xf32>
    %155 = vector.extract_strided_slice %132 {offsets = [0, 96], sizes = [2, 32], strides = [1, 1]} : vector<2x128xf32> to vector<2x32xf32>
    %156 = math.tanh %155 : vector<2x32xf32>
    %157 = vector.extract_strided_slice %154 {offsets = [0, 0], sizes = [2, 32], strides = [1, 1]} : vector<2x96xf32> to vector<2x32xf32>
    %158 = vector.extract_strided_slice %154 {offsets = [0, 32], sizes = [2, 32], strides = [1, 1]} : vector<2x96xf32> to vector<2x32xf32>
    %159 = vector.extract_strided_slice %154 {offsets = [0, 64], sizes = [2, 32], strides = [1, 1]} : vector<2x96xf32> to vector<2x32xf32>
    %160 = arith.mulf %158, %107 : vector<2x32xf32>
    %161 = arith.mulf %157, %156 : vector<2x32xf32>
    %162 = arith.addf %160, %161 : vector<2x32xf32>
    %163 = math.tanh %162 : vector<2x32xf32>
    %164 = arith.mulf %159, %163 : vector<2x32xf32>
    %165 = arith.index_cast %c2_i32 : i32 to index
    %c0_46 = arith.constant 0 : index
    %c0_47 = arith.constant 0 : index
    %166 = vector.load %arg5[%165, %c0_46, %c0_47] : memref<8x2x64xf32, #tpu.memory_space<vmem>>, vector<1x2x32xf32>
    %167 = vector.shape_cast %166 : vector<1x2x32xf32> to vector<2x32xf32>
    %168 = vector.shape_cast %148 : vector<2x32xf32> to vector<1x2x32xf32>
    tpu.vector_store %arg5[%165, %c0_46, %c0_47], %168 {strides = array<i32>} : memref<8x2x64xf32, #tpu.memory_space<vmem>>, vector<1x2x32xf32>,
    %169 = arith.index_cast %120 : i32 to index
    %c0_48 = arith.constant 0 : index
    %c32_49 = arith.constant 32 : index
    %170 = vector.load %arg5[%169, %c0_48, %c32_49] : memref<8x2x64xf32, #tpu.memory_space<vmem>>, vector<1x2x32xf32>
    %171 = vector.shape_cast %170 : vector<1x2x32xf32> to vector<2x32xf32>
    %172 = vector.shape_cast %164 : vector<2x32xf32> to vector<1x2x32xf32>
    tpu.vector_store %arg5[%169, %c0_48, %c32_49], %172 {strides = array<i32>} : memref<8x2x64xf32, #tpu.memory_space<vmem>>, vector<1x2x32xf32>,
    %173 = tpu.concatenate %148, %164 in 1 : vector<2x32xf32>, vector<2x32xf32> -> vector<2x64xf32>
    %174 = arith.truncf %173 : vector<2x64xf32> to vector<2x64xbf16>
    %c3_i32 = arith.constant 3 : i32
    %c7_i32_50 = arith.constant 7 : i32
    %175 = arith.subi %c7_i32_50, %c3_i32 : i32
    %c0_51 = arith.constant 0 : index
    %c0_52 = arith.constant 0 : index
    %176 = vector.load %arg3[%c0_51, %c0_52] : memref<64x256xbf16, #tpu.memory_space<vmem>>, vector<64x256xbf16>
    %cst_53 = arith.constant dense<0.000000e+00> : vector<2x256xf32>
    %177 = tpu.matmul %174, %176, %cst_53 {dimension_numbers = #tpu.dot_dimension_numbers<[1], [0], [0], [1], [0, 0, 1, 1], [], []>} : vector<2x64xbf16>, vector<64x256xbf16>, vector<2x256xf32> -> vector<2x256xf32>
    %178 = arith.index_cast %c3_i32 : i32 to index
    %c0_54 = arith.constant 0 : index
    %c0_55 = arith.constant 0 : index
    %179 = vector.load %arg6[%178, %c0_54, %c0_55] : memref<8x2x256xf32, #tpu.memory_space<vmem>>, vector<1x2x128xf32>
    %180 = vector.shape_cast %179 : vector<1x2x128xf32> to vector<2x128xf32>
    %181 = vector.extract_strided_slice %177 {offsets = [0, 0], sizes = [2, 128], strides = [1, 1]} : vector<2x256xf32> to vector<2x128xf32>
    %182 = arith.addf %180, %181 : vector<2x128xf32>
    %183 = arith.index_cast %175 : i32 to index
    %c0_56 = arith.constant 0 : index
    %c128_57 = arith.constant 128 : index
    %184 = vector.load %arg6[%183, %c0_56, %c128_57] : memref<8x2x256xf32, #tpu.memory_space<vmem>>, vector<1x2x128xf32>
    %185 = vector.shape_cast %184 : vector<1x2x128xf32> to vector<2x128xf32>
    %186 = vector.extract_strided_slice %177 {offsets = [0, 128], sizes = [2, 128], strides = [1, 1]} : vector<2x256xf32> to vector<2x128xf32>
    %187 = arith.addf %185, %186 : vector<2x128xf32>
    %188 = vector.extract_strided_slice %182 {offsets = [0, 0], sizes = [2, 96], strides = [1, 1]} : vector<2x128xf32> to vector<2x96xf32>
    %189 = arith.negf %188 : vector<2x96xf32>
    %190 = math.exp %189 : vector<2x96xf32>
    %cst_58 = arith.constant 1.000000e+00 : f32
    %191 = vector.broadcast %cst_58 : f32 to vector<2x96xf32>
    %192 = arith.addf %191, %190 : vector<2x96xf32>
    %193 = arith.divf %191, %192 : vector<2x96xf32>
    %194 = vector.extract_strided_slice %182 {offsets = [0, 96], sizes = [2, 32], strides = [1, 1]} : vector<2x128xf32> to vector<2x32xf32>
    %195 = math.tanh %194 : vector<2x32xf32>
    %196 = vector.extract_strided_slice %193 {offsets = [0, 0], sizes = [2, 32], strides = [1, 1]} : vector<2x96xf32> to vector<2x32xf32>
    %197 = vector.extract_strided_slice %193 {offsets = [0, 32], sizes = [2, 32], strides = [1, 1]} : vector<2x96xf32> to vector<2x32xf32>
    %198 = vector.extract_strided_slice %193 {offsets = [0, 64], sizes = [2, 32], strides = [1, 1]} : vector<2x96xf32> to vector<2x32xf32>
    %199 = arith.mulf %197, %146 : vector<2x32xf32>
    %200 = arith.mulf %196, %195 : vector<2x32xf32>
    %201 = arith.addf %199, %200 : vector<2x32xf32>
    %202 = math.tanh %201 : vector<2x32xf32>
    %203 = arith.mulf %198, %202 : vector<2x32xf32>
    %204 = vector.extract_strided_slice %187 {offsets = [0, 0], sizes = [2, 96], strides = [1, 1]} : vector<2x128xf32> to vector<2x96xf32>
    %205 = arith.negf %204 : vector<2x96xf32>
    %206 = math.exp %205 : vector<2x96xf32>
    %cst_59 = arith.constant 1.000000e+00 : f32
    %207 = vector.broadcast %cst_59 : f32 to vector<2x96xf32>
    %208 = arith.addf %207, %206 : vector<2x96xf32>
    %209 = arith.divf %207, %208 : vector<2x96xf32>
    %210 = vector.extract_strided_slice %187 {offsets = [0, 96], sizes = [2, 32], strides = [1, 1]} : vector<2x128xf32> to vector<2x32xf32>
    %211 = math.tanh %210 : vector<2x32xf32>
    %212 = vector.extract_strided_slice %209 {offsets = [0, 0], sizes = [2, 32], strides = [1, 1]} : vector<2x96xf32> to vector<2x32xf32>
    %213 = vector.extract_strided_slice %209 {offsets = [0, 32], sizes = [2, 32], strides = [1, 1]} : vector<2x96xf32> to vector<2x32xf32>
    %214 = vector.extract_strided_slice %209 {offsets = [0, 64], sizes = [2, 32], strides = [1, 1]} : vector<2x96xf32> to vector<2x32xf32>
    %215 = arith.mulf %213, %162 : vector<2x32xf32>
    %216 = arith.mulf %212, %211 : vector<2x32xf32>
    %217 = arith.addf %215, %216 : vector<2x32xf32>
    %218 = math.tanh %217 : vector<2x32xf32>
    %219 = arith.mulf %214, %218 : vector<2x32xf32>
    %220 = arith.index_cast %c3_i32 : i32 to index
    %c0_60 = arith.constant 0 : index
    %c0_61 = arith.constant 0 : index
    %221 = vector.load %arg5[%220, %c0_60, %c0_61] : memref<8x2x64xf32, #tpu.memory_space<vmem>>, vector<1x2x32xf32>
    %222 = vector.shape_cast %221 : vector<1x2x32xf32> to vector<2x32xf32>
    %223 = vector.shape_cast %203 : vector<2x32xf32> to vector<1x2x32xf32>
    tpu.vector_store %arg5[%220, %c0_60, %c0_61], %223 {strides = array<i32>} : memref<8x2x64xf32, #tpu.memory_space<vmem>>, vector<1x2x32xf32>,
    %224 = arith.index_cast %175 : i32 to index
    %c0_62 = arith.constant 0 : index
    %c32_63 = arith.constant 32 : index
    %225 = vector.load %arg5[%224, %c0_62, %c32_63] : memref<8x2x64xf32, #tpu.memory_space<vmem>>, vector<1x2x32xf32>
    %226 = vector.shape_cast %225 : vector<1x2x32xf32> to vector<2x32xf32>
    %227 = vector.shape_cast %219 : vector<2x32xf32> to vector<1x2x32xf32>
    tpu.vector_store %arg5[%224, %c0_62, %c32_63], %227 {strides = array<i32>} : memref<8x2x64xf32, #tpu.memory_space<vmem>>, vector<1x2x32xf32>,
    %228 = tpu.concatenate %203, %219 in 1 : vector<2x32xf32>, vector<2x32xf32> -> vector<2x64xf32>
    %229 = arith.truncf %228 : vector<2x64xf32> to vector<2x64xbf16>
    %c4_i32 = arith.constant 4 : i32
    %c7_i32_64 = arith.constant 7 : i32
    %230 = arith.subi %c7_i32_64, %c4_i32 : i32
    %c0_65 = arith.constant 0 : index
    %c0_66 = arith.constant 0 : index
    %231 = vector.load %arg3[%c0_65, %c0_66] : memref<64x256xbf16, #tpu.memory_space<vmem>>, vector<64x256xbf16>
    %cst_67 = arith.constant dense<0.000000e+00> : vector<2x256xf32>
    %232 = tpu.matmul %229, %231, %cst_67 {dimension_numbers = #tpu.dot_dimension_numbers<[1], [0], [0], [1], [0, 0, 1, 1], [], []>} : vector<2x64xbf16>, vector<64x256xbf16>, vector<2x256xf32> -> vector<2x256xf32>
    %233 = arith.index_cast %c4_i32 : i32 to index
    %c0_68 = arith.constant 0 : index
    %c0_69 = arith.constant 0 : index
    %234 = vector.load %arg6[%233, %c0_68, %c0_69] : memref<8x2x256xf32, #tpu.memory_space<vmem>>, vector<1x2x128xf32>
    %235 = vector.shape_cast %234 : vector<1x2x128xf32> to vector<2x128xf32>
    %236 = vector.extract_strided_slice %232 {offsets = [0, 0], sizes = [2, 128], strides = [1, 1]} : vector<2x256xf32> to vector<2x128xf32>
    %237 = arith.addf %235, %236 : vector<2x128xf32>
    %238 = arith.index_cast %230 : i32 to index
    %c0_70 = arith.constant 0 : index
    %c128_71 = arith.constant 128 : index
    %239 = vector.load %arg6[%238, %c0_70, %c128_71] : memref<8x2x256xf32, #tpu.memory_space<vmem>>, vector<1x2x128xf32>
    %240 = vector.shape_cast %239 : vector<1x2x128xf32> to vector<2x128xf32>
    %241 = vector.extract_strided_slice %232 {offsets = [0, 128], sizes = [2, 128], strides = [1, 1]} : vector<2x256xf32> to vector<2x128xf32>
    %242 = arith.addf %240, %241 : vector<2x128xf32>
    %243 = vector.extract_strided_slice %237 {offsets = [0, 0], sizes = [2, 96], strides = [1, 1]} : vector<2x128xf32> to vector<2x96xf32>
    %244 = arith.negf %243 : vector<2x96xf32>
    %245 = math.exp %244 : vector<2x96xf32>
    %cst_72 = arith.constant 1.000000e+00 : f32
    %246 = vector.broadcast %cst_72 : f32 to vector<2x96xf32>
    %247 = arith.addf %246, %245 : vector<2x96xf32>
    %248 = arith.divf %246, %247 : vector<2x96xf32>
    %249 = vector.extract_strided_slice %237 {offsets = [0, 96], sizes = [2, 32], strides = [1, 1]} : vector<2x128xf32> to vector<2x32xf32>
    %250 = math.tanh %249 : vector<2x32xf32>
    %251 = vector.extract_strided_slice %248 {offsets = [0, 0], sizes = [2, 32], strides = [1, 1]} : vector<2x96xf32> to vector<2x32xf32>
    %252 = vector.extract_strided_slice %248 {offsets = [0, 32], sizes = [2, 32], strides = [1, 1]} : vector<2x96xf32> to vector<2x32xf32>
    %253 = vector.extract_strided_slice %248 {offsets = [0, 64], sizes = [2, 32], strides = [1, 1]} : vector<2x96xf32> to vector<2x32xf32>
    %254 = arith.mulf %252, %201 : vector<2x32xf32>
    %255 = arith.mulf %251, %250 : vector<2x32xf32>
    %256 = arith.addf %254, %255 : vector<2x32xf32>
    %257 = math.tanh %256 : vector<2x32xf32>
    %258 = arith.mulf %253, %257 : vector<2x32xf32>
    %259 = vector.extract_strided_slice %242 {offsets = [0, 0], sizes = [2, 96], strides = [1, 1]} : vector<2x128xf32> to vector<2x96xf32>
    %260 = arith.negf %259 : vector<2x96xf32>
    %261 = math.exp %260 : vector<2x96xf32>
    %cst_73 = arith.constant 1.000000e+00 : f32
    %262 = vector.broadcast %cst_73 : f32 to vector<2x96xf32>
    %263 = arith.addf %262, %261 : vector<2x96xf32>
    %264 = arith.divf %262, %263 : vector<2x96xf32>
    %265 = vector.extract_strided_slice %242 {offsets = [0, 96], sizes = [2, 32], strides = [1, 1]} : vector<2x128xf32> to vector<2x32xf32>
    %266 = math.tanh %265 : vector<2x32xf32>
    %267 = vector.extract_strided_slice %264 {offsets = [0, 0], sizes = [2, 32], strides = [1, 1]} : vector<2x96xf32> to vector<2x32xf32>
    %268 = vector.extract_strided_slice %264 {offsets = [0, 32], sizes = [2, 32], strides = [1, 1]} : vector<2x96xf32> to vector<2x32xf32>
    %269 = vector.extract_strided_slice %264 {offsets = [0, 64], sizes = [2, 32], strides = [1, 1]} : vector<2x96xf32> to vector<2x32xf32>
    %270 = arith.mulf %268, %217 : vector<2x32xf32>
    %271 = arith.mulf %267, %266 : vector<2x32xf32>
    %272 = arith.addf %270, %271 : vector<2x32xf32>
    %273 = math.tanh %272 : vector<2x32xf32>
    %274 = arith.mulf %269, %273 : vector<2x32xf32>
    %275 = arith.index_cast %c4_i32 : i32 to index
    %c0_74 = arith.constant 0 : index
    %c0_75 = arith.constant 0 : index
    %276 = vector.load %arg5[%275, %c0_74, %c0_75] : memref<8x2x64xf32, #tpu.memory_space<vmem>>, vector<1x2x32xf32>
    %277 = vector.shape_cast %276 : vector<1x2x32xf32> to vector<2x32xf32>
    %278 = vector.shape_cast %258 : vector<2x32xf32> to vector<1x2x32xf32>
    tpu.vector_store %arg5[%275, %c0_74, %c0_75], %278 {strides = array<i32>} : memref<8x2x64xf32, #tpu.memory_space<vmem>>, vector<1x2x32xf32>,
    %279 = arith.index_cast %230 : i32 to index
    %c0_76 = arith.constant 0 : index
    %c32_77 = arith.constant 32 : index
    %280 = vector.load %arg5[%279, %c0_76, %c32_77] : memref<8x2x64xf32, #tpu.memory_space<vmem>>, vector<1x2x32xf32>
    %281 = vector.shape_cast %280 : vector<1x2x32xf32> to vector<2x32xf32>
    %282 = vector.shape_cast %274 : vector<2x32xf32> to vector<1x2x32xf32>
    tpu.vector_store %arg5[%279, %c0_76, %c32_77], %282 {strides = array<i32>} : memref<8x2x64xf32, #tpu.memory_space<vmem>>, vector<1x2x32xf32>,
    %283 = tpu.concatenate %258, %274 in 1 : vector<2x32xf32>, vector<2x32xf32> -> vector<2x64xf32>
    %284 = arith.truncf %283 : vector<2x64xf32> to vector<2x64xbf16>
    %c5_i32 = arith.constant 5 : i32
    %c7_i32_78 = arith.constant 7 : i32
    %285 = arith.subi %c7_i32_78, %c5_i32 : i32
    %c0_79 = arith.constant 0 : index
    %c0_80 = arith.constant 0 : index
    %286 = vector.load %arg3[%c0_79, %c0_80] : memref<64x256xbf16, #tpu.memory_space<vmem>>, vector<64x256xbf16>
    %cst_81 = arith.constant dense<0.000000e+00> : vector<2x256xf32>
    %287 = tpu.matmul %284, %286, %cst_81 {dimension_numbers = #tpu.dot_dimension_numbers<[1], [0], [0], [1], [0, 0, 1, 1], [], []>} : vector<2x64xbf16>, vector<64x256xbf16>, vector<2x256xf32> -> vector<2x256xf32>
    %288 = arith.index_cast %c5_i32 : i32 to index
    %c0_82 = arith.constant 0 : index
    %c0_83 = arith.constant 0 : index
    %289 = vector.load %arg6[%288, %c0_82, %c0_83] : memref<8x2x256xf32, #tpu.memory_space<vmem>>, vector<1x2x128xf32>
    %290 = vector.shape_cast %289 : vector<1x2x128xf32> to vector<2x128xf32>
    %291 = vector.extract_strided_slice %287 {offsets = [0, 0], sizes = [2, 128], strides = [1, 1]} : vector<2x256xf32> to vector<2x128xf32>
    %292 = arith.addf %290, %291 : vector<2x128xf32>
    %293 = arith.index_cast %285 : i32 to index
    %c0_84 = arith.constant 0 : index
    %c128_85 = arith.constant 128 : index
    %294 = vector.load %arg6[%293, %c0_84, %c128_85] : memref<8x2x256xf32, #tpu.memory_space<vmem>>, vector<1x2x128xf32>
    %295 = vector.shape_cast %294 : vector<1x2x128xf32> to vector<2x128xf32>
    %296 = vector.extract_strided_slice %287 {offsets = [0, 128], sizes = [2, 128], strides = [1, 1]} : vector<2x256xf32> to vector<2x128xf32>
    %297 = arith.addf %295, %296 : vector<2x128xf32>
    %298 = vector.extract_strided_slice %292 {offsets = [0, 0], sizes = [2, 96], strides = [1, 1]} : vector<2x128xf32> to vector<2x96xf32>
    %299 = arith.negf %298 : vector<2x96xf32>
    %300 = math.exp %299 : vector<2x96xf32>
    %cst_86 = arith.constant 1.000000e+00 : f32
    %301 = vector.broadcast %cst_86 : f32 to vector<2x96xf32>
    %302 = arith.addf %301, %300 : vector<2x96xf32>
    %303 = arith.divf %301, %302 : vector<2x96xf32>
    %304 = vector.extract_strided_slice %292 {offsets = [0, 96], sizes = [2, 32], strides = [1, 1]} : vector<2x128xf32> to vector<2x32xf32>
    %305 = math.tanh %304 : vector<2x32xf32>
    %306 = vector.extract_strided_slice %303 {offsets = [0, 0], sizes = [2, 32], strides = [1, 1]} : vector<2x96xf32> to vector<2x32xf32>
    %307 = vector.extract_strided_slice %303 {offsets = [0, 32], sizes = [2, 32], strides = [1, 1]} : vector<2x96xf32> to vector<2x32xf32>
    %308 = vector.extract_strided_slice %303 {offsets = [0, 64], sizes = [2, 32], strides = [1, 1]} : vector<2x96xf32> to vector<2x32xf32>
    %309 = arith.mulf %307, %256 : vector<2x32xf32>
    %310 = arith.mulf %306, %305 : vector<2x32xf32>
    %311 = arith.addf %309, %310 : vector<2x32xf32>
    %312 = math.tanh %311 : vector<2x32xf32>
    %313 = arith.mulf %308, %312 : vector<2x32xf32>
    %314 = vector.extract_strided_slice %297 {offsets = [0, 0], sizes = [2, 96], strides = [1, 1]} : vector<2x128xf32> to vector<2x96xf32>
    %315 = arith.negf %314 : vector<2x96xf32>
    %316 = math.exp %315 : vector<2x96xf32>
    %cst_87 = arith.constant 1.000000e+00 : f32
    %317 = vector.broadcast %cst_87 : f32 to vector<2x96xf32>
    %318 = arith.addf %317, %316 : vector<2x96xf32>
    %319 = arith.divf %317, %318 : vector<2x96xf32>
    %320 = vector.extract_strided_slice %297 {offsets = [0, 96], sizes = [2, 32], strides = [1, 1]} : vector<2x128xf32> to vector<2x32xf32>
    %321 = math.tanh %320 : vector<2x32xf32>
    %322 = vector.extract_strided_slice %319 {offsets = [0, 0], sizes = [2, 32], strides = [1, 1]} : vector<2x96xf32> to vector<2x32xf32>
    %323 = vector.extract_strided_slice %319 {offsets = [0, 32], sizes = [2, 32], strides = [1, 1]} : vector<2x96xf32> to vector<2x32xf32>
    %324 = vector.extract_strided_slice %319 {offsets = [0, 64], sizes = [2, 32], strides = [1, 1]} : vector<2x96xf32> to vector<2x32xf32>
    %325 = arith.mulf %323, %272 : vector<2x32xf32>
    %326 = arith.mulf %322, %321 : vector<2x32xf32>
    %327 = arith.addf %325, %326 : vector<2x32xf32>
    %328 = math.tanh %327 : vector<2x32xf32>
    %329 = arith.mulf %324, %328 : vector<2x32xf32>
    %330 = arith.index_cast %c5_i32 : i32 to index
    %c0_88 = arith.constant 0 : index
    %c0_89 = arith.constant 0 : index
    %331 = vector.load %arg5[%330, %c0_88, %c0_89] : memref<8x2x64xf32, #tpu.memory_space<vmem>>, vector<1x2x32xf32>
    %332 = vector.shape_cast %331 : vector<1x2x32xf32> to vector<2x32xf32>
    %333 = vector.shape_cast %313 : vector<2x32xf32> to vector<1x2x32xf32>
    tpu.vector_store %arg5[%330, %c0_88, %c0_89], %333 {strides = array<i32>} : memref<8x2x64xf32, #tpu.memory_space<vmem>>, vector<1x2x32xf32>,
    %334 = arith.index_cast %285 : i32 to index
    %c0_90 = arith.constant 0 : index
    %c32_91 = arith.constant 32 : index
    %335 = vector.load %arg5[%334, %c0_90, %c32_91] : memref<8x2x64xf32, #tpu.memory_space<vmem>>, vector<1x2x32xf32>
    %336 = vector.shape_cast %335 : vector<1x2x32xf32> to vector<2x32xf32>
    %337 = vector.shape_cast %329 : vector<2x32xf32> to vector<1x2x32xf32>
    tpu.vector_store %arg5[%334, %c0_90, %c32_91], %337 {strides = array<i32>} : memref<8x2x64xf32, #tpu.memory_space<vmem>>, vector<1x2x32xf32>,
    %338 = tpu.concatenate %313, %329 in 1 : vector<2x32xf32>, vector<2x32xf32> -> vector<2x64xf32>
    %339 = arith.truncf %338 : vector<2x64xf32> to vector<2x64xbf16>
    %c6_i32 = arith.constant 6 : i32
    %c7_i32_92 = arith.constant 7 : i32
    %340 = arith.subi %c7_i32_92, %c6_i32 : i32
    %c0_93 = arith.constant 0 : index
    %c0_94 = arith.constant 0 : index
    %341 = vector.load %arg3[%c0_93, %c0_94] : memref<64x256xbf16, #tpu.memory_space<vmem>>, vector<64x256xbf16>
    %cst_95 = arith.constant dense<0.000000e+00> : vector<2x256xf32>
    %342 = tpu.matmul %339, %341, %cst_95 {dimension_numbers = #tpu.dot_dimension_numbers<[1], [0], [0], [1], [0, 0, 1, 1], [], []>} : vector<2x64xbf16>, vector<64x256xbf16>, vector<2x256xf32> -> vector<2x256xf32>
    %343 = arith.index_cast %c6_i32 : i32 to index
    %c0_96 = arith.constant 0 : index
    %c0_97 = arith.constant 0 : index
    %344 = vector.load %arg6[%343, %c0_96, %c0_97] : memref<8x2x256xf32, #tpu.memory_space<vmem>>, vector<1x2x128xf32>
    %345 = vector.shape_cast %344 : vector<1x2x128xf32> to vector<2x128xf32>
    %346 = vector.extract_strided_slice %342 {offsets = [0, 0], sizes = [2, 128], strides = [1, 1]} : vector<2x256xf32> to vector<2x128xf32>
    %347 = arith.addf %345, %346 : vector<2x128xf32>
    %348 = arith.index_cast %340 : i32 to index
    %c0_98 = arith.constant 0 : index
    %c128_99 = arith.constant 128 : index
    %349 = vector.load %arg6[%348, %c0_98, %c128_99] : memref<8x2x256xf32, #tpu.memory_space<vmem>>, vector<1x2x128xf32>
    %350 = vector.shape_cast %349 : vector<1x2x128xf32> to vector<2x128xf32>
    %351 = vector.extract_strided_slice %342 {offsets = [0, 128], sizes = [2, 128], strides = [1, 1]} : vector<2x256xf32> to vector<2x128xf32>
    %352 = arith.addf %350, %351 : vector<2x128xf32>
    %353 = vector.extract_strided_slice %347 {offsets = [0, 0], sizes = [2, 96], strides = [1, 1]} : vector<2x128xf32> to vector<2x96xf32>
    %354 = arith.negf %353 : vector<2x96xf32>
    %355 = math.exp %354 : vector<2x96xf32>
    %cst_100 = arith.constant 1.000000e+00 : f32
    %356 = vector.broadcast %cst_100 : f32 to vector<2x96xf32>
    %357 = arith.addf %356, %355 : vector<2x96xf32>
    %358 = arith.divf %356, %357 : vector<2x96xf32>
    %359 = vector.extract_strided_slice %347 {offsets = [0, 96], sizes = [2, 32], strides = [1, 1]} : vector<2x128xf32> to vector<2x32xf32>
    %360 = math.tanh %359 : vector<2x32xf32>
    %361 = vector.extract_strided_slice %358 {offsets = [0, 0], sizes = [2, 32], strides = [1, 1]} : vector<2x96xf32> to vector<2x32xf32>
    %362 = vector.extract_strided_slice %358 {offsets = [0, 32], sizes = [2, 32], strides = [1, 1]} : vector<2x96xf32> to vector<2x32xf32>
    %363 = vector.extract_strided_slice %358 {offsets = [0, 64], sizes = [2, 32], strides = [1, 1]} : vector<2x96xf32> to vector<2x32xf32>
    %364 = arith.mulf %362, %311 : vector<2x32xf32>
    %365 = arith.mulf %361, %360 : vector<2x32xf32>
    %366 = arith.addf %364, %365 : vector<2x32xf32>
    %367 = math.tanh %366 : vector<2x32xf32>
    %368 = arith.mulf %363, %367 : vector<2x32xf32>
    %369 = vector.extract_strided_slice %352 {offsets = [0, 0], sizes = [2, 96], strides = [1, 1]} : vector<2x128xf32> to vector<2x96xf32>
    %370 = arith.negf %369 : vector<2x96xf32>
    %371 = math.exp %370 : vector<2x96xf32>
    %cst_101 = arith.constant 1.000000e+00 : f32
    %372 = vector.broadcast %cst_101 : f32 to vector<2x96xf32>
    %373 = arith.addf %372, %371 : vector<2x96xf32>
    %374 = arith.divf %372, %373 : vector<2x96xf32>
    %375 = vector.extract_strided_slice %352 {offsets = [0, 96], sizes = [2, 32], strides = [1, 1]} : vector<2x128xf32> to vector<2x32xf32>
    %376 = math.tanh %375 : vector<2x32xf32>
    %377 = vector.extract_strided_slice %374 {offsets = [0, 0], sizes = [2, 32], strides = [1, 1]} : vector<2x96xf32> to vector<2x32xf32>
    %378 = vector.extract_strided_slice %374 {offsets = [0, 32], sizes = [2, 32], strides = [1, 1]} : vector<2x96xf32> to vector<2x32xf32>
    %379 = vector.extract_strided_slice %374 {offsets = [0, 64], sizes = [2, 32], strides = [1, 1]} : vector<2x96xf32> to vector<2x32xf32>
    %380 = arith.mulf %378, %327 : vector<2x32xf32>
    %381 = arith.mulf %377, %376 : vector<2x32xf32>
    %382 = arith.addf %380, %381 : vector<2x32xf32>
    %383 = math.tanh %382 : vector<2x32xf32>
    %384 = arith.mulf %379, %383 : vector<2x32xf32>
    %385 = arith.index_cast %c6_i32 : i32 to index
    %c0_102 = arith.constant 0 : index
    %c0_103 = arith.constant 0 : index
    %386 = vector.load %arg5[%385, %c0_102, %c0_103] : memref<8x2x64xf32, #tpu.memory_space<vmem>>, vector<1x2x32xf32>
    %387 = vector.shape_cast %386 : vector<1x2x32xf32> to vector<2x32xf32>
    %388 = vector.shape_cast %368 : vector<2x32xf32> to vector<1x2x32xf32>
    tpu.vector_store %arg5[%385, %c0_102, %c0_103], %388 {strides = array<i32>} : memref<8x2x64xf32, #tpu.memory_space<vmem>>, vector<1x2x32xf32>,
    %389 = arith.index_cast %340 : i32 to index
    %c0_104 = arith.constant 0 : index
    %c32_105 = arith.constant 32 : index
    %390 = vector.load %arg5[%389, %c0_104, %c32_105] : memref<8x2x64xf32, #tpu.memory_space<vmem>>, vector<1x2x32xf32>
    %391 = vector.shape_cast %390 : vector<1x2x32xf32> to vector<2x32xf32>
    %392 = vector.shape_cast %384 : vector<2x32xf32> to vector<1x2x32xf32>
    tpu.vector_store %arg5[%389, %c0_104, %c32_105], %392 {strides = array<i32>} : memref<8x2x64xf32, #tpu.memory_space<vmem>>, vector<1x2x32xf32>,
    %393 = tpu.concatenate %368, %384 in 1 : vector<2x32xf32>, vector<2x32xf32> -> vector<2x64xf32>
    %394 = arith.truncf %393 : vector<2x64xf32> to vector<2x64xbf16>
    %c7_i32_106 = arith.constant 7 : i32
    %c7_i32_107 = arith.constant 7 : i32
    %395 = arith.subi %c7_i32_107, %c7_i32_106 : i32
    %c0_108 = arith.constant 0 : index
    %c0_109 = arith.constant 0 : index
    %396 = vector.load %arg3[%c0_108, %c0_109] : memref<64x256xbf16, #tpu.memory_space<vmem>>, vector<64x256xbf16>
    %cst_110 = arith.constant dense<0.000000e+00> : vector<2x256xf32>
    %397 = tpu.matmul %394, %396, %cst_110 {dimension_numbers = #tpu.dot_dimension_numbers<[1], [0], [0], [1], [0, 0, 1, 1], [], []>} : vector<2x64xbf16>, vector<64x256xbf16>, vector<2x256xf32> -> vector<2x256xf32>
    %398 = arith.index_cast %c7_i32_106 : i32 to index
    %c0_111 = arith.constant 0 : index
    %c0_112 = arith.constant 0 : index
    %399 = vector.load %arg6[%398, %c0_111, %c0_112] : memref<8x2x256xf32, #tpu.memory_space<vmem>>, vector<1x2x128xf32>
    %400 = vector.shape_cast %399 : vector<1x2x128xf32> to vector<2x128xf32>
    %401 = vector.extract_strided_slice %397 {offsets = [0, 0], sizes = [2, 128], strides = [1, 1]} : vector<2x256xf32> to vector<2x128xf32>
    %402 = arith.addf %400, %401 : vector<2x128xf32>
    %403 = arith.index_cast %395 : i32 to index
    %c0_113 = arith.constant 0 : index
    %c128_114 = arith.constant 128 : index
    %404 = vector.load %arg6[%403, %c0_113, %c128_114] : memref<8x2x256xf32, #tpu.memory_space<vmem>>, vector<1x2x128xf32>
    %405 = vector.shape_cast %404 : vector<1x2x128xf32> to vector<2x128xf32>
    %406 = vector.extract_strided_slice %397 {offsets = [0, 128], sizes = [2, 128], strides = [1, 1]} : vector<2x256xf32> to vector<2x128xf32>
    %407 = arith.addf %405, %406 : vector<2x128xf32>
    %408 = vector.extract_strided_slice %402 {offsets = [0, 0], sizes = [2, 96], strides = [1, 1]} : vector<2x128xf32> to vector<2x96xf32>
    %409 = arith.negf %408 : vector<2x96xf32>
    %410 = math.exp %409 : vector<2x96xf32>
    %cst_115 = arith.constant 1.000000e+00 : f32
    %411 = vector.broadcast %cst_115 : f32 to vector<2x96xf32>
    %412 = arith.addf %411, %410 : vector<2x96xf32>
    %413 = arith.divf %411, %412 : vector<2x96xf32>
    %414 = vector.extract_strided_slice %402 {offsets = [0, 96], sizes = [2, 32], strides = [1, 1]} : vector<2x128xf32> to vector<2x32xf32>
    %415 = math.tanh %414 : vector<2x32xf32>
    %416 = vector.extract_strided_slice %413 {offsets = [0, 0], sizes = [2, 32], strides = [1, 1]} : vector<2x96xf32> to vector<2x32xf32>
    %417 = vector.extract_strided_slice %413 {offsets = [0, 32], sizes = [2, 32], strides = [1, 1]} : vector<2x96xf32> to vector<2x32xf32>
    %418 = vector.extract_strided_slice %413 {offsets = [0, 64], sizes = [2, 32], strides = [1, 1]} : vector<2x96xf32> to vector<2x32xf32>
    %419 = arith.mulf %417, %366 : vector<2x32xf32>
    %420 = arith.mulf %416, %415 : vector<2x32xf32>
    %421 = arith.addf %419, %420 : vector<2x32xf32>
    %422 = math.tanh %421 : vector<2x32xf32>
    %423 = arith.mulf %418, %422 : vector<2x32xf32>
    %424 = vector.extract_strided_slice %407 {offsets = [0, 0], sizes = [2, 96], strides = [1, 1]} : vector<2x128xf32> to vector<2x96xf32>
    %425 = arith.negf %424 : vector<2x96xf32>
    %426 = math.exp %425 : vector<2x96xf32>
    %cst_116 = arith.constant 1.000000e+00 : f32
    %427 = vector.broadcast %cst_116 : f32 to vector<2x96xf32>
    %428 = arith.addf %427, %426 : vector<2x96xf32>
    %429 = arith.divf %427, %428 : vector<2x96xf32>
    %430 = vector.extract_strided_slice %407 {offsets = [0, 96], sizes = [2, 32], strides = [1, 1]} : vector<2x128xf32> to vector<2x32xf32>
    %431 = math.tanh %430 : vector<2x32xf32>
    %432 = vector.extract_strided_slice %429 {offsets = [0, 0], sizes = [2, 32], strides = [1, 1]} : vector<2x96xf32> to vector<2x32xf32>
    %433 = vector.extract_strided_slice %429 {offsets = [0, 32], sizes = [2, 32], strides = [1, 1]} : vector<2x96xf32> to vector<2x32xf32>
    %434 = vector.extract_strided_slice %429 {offsets = [0, 64], sizes = [2, 32], strides = [1, 1]} : vector<2x96xf32> to vector<2x32xf32>
    %435 = arith.mulf %433, %382 : vector<2x32xf32>
    %436 = arith.mulf %432, %431 : vector<2x32xf32>
    %437 = arith.addf %435, %436 : vector<2x32xf32>
    %438 = math.tanh %437 : vector<2x32xf32>
    %439 = arith.mulf %434, %438 : vector<2x32xf32>
    %440 = arith.index_cast %c7_i32_106 : i32 to index
    %c0_117 = arith.constant 0 : index
    %c0_118 = arith.constant 0 : index
    %441 = vector.load %arg5[%440, %c0_117, %c0_118] : memref<8x2x64xf32, #tpu.memory_space<vmem>>, vector<1x2x32xf32>
    %442 = vector.shape_cast %441 : vector<1x2x32xf32> to vector<2x32xf32>
    %443 = vector.shape_cast %423 : vector<2x32xf32> to vector<1x2x32xf32>
    tpu.vector_store %arg5[%440, %c0_117, %c0_118], %443 {strides = array<i32>} : memref<8x2x64xf32, #tpu.memory_space<vmem>>, vector<1x2x32xf32>,
    %444 = arith.index_cast %395 : i32 to index
    %c0_119 = arith.constant 0 : index
    %c32_120 = arith.constant 32 : index
    %445 = vector.load %arg5[%444, %c0_119, %c32_120] : memref<8x2x64xf32, #tpu.memory_space<vmem>>, vector<1x2x32xf32>
    %446 = vector.shape_cast %445 : vector<1x2x32xf32> to vector<2x32xf32>
    %447 = vector.shape_cast %439 : vector<2x32xf32> to vector<1x2x32xf32>
    tpu.vector_store %arg5[%444, %c0_119, %c32_120], %447 {strides = array<i32>} : memref<8x2x64xf32, #tpu.memory_space<vmem>>, vector<1x2x32xf32>,
    %448 = tpu.concatenate %423, %439 in 1 : vector<2x32xf32>, vector<2x32xf32> -> vector<2x64xf32>
    %449 = arith.truncf %448 : vector<2x64xf32> to vector<2x64xbf16>
    %c8_i32 = arith.constant 8 : i32
    return
  }
  func.func @transform_0(%arg0: i32) -> (i32, i32, i32) {
    %c0_i32 = arith.constant 0 : i32
    %c0_i32_0 = arith.constant 0 : i32
    %c0_i32_1 = arith.constant 0 : i32
    return %c0_i32, %arg0, %c0_i32_0 : i32, i32, i32
  }
  func.func @transform_1(%arg0: i32) -> (i32, i32) {
    %c0_i32 = arith.constant 0 : i32
    %c0_i32_0 = arith.constant 0 : i32
    %c0_i32_1 = arith.constant 0 : i32
    return %c0_i32, %c0_i32_0 : i32, i32
  }
  func.func @transform_2(%arg0: i32) -> (i32, i32) {
    %c0_i32 = arith.constant 0 : i32
    %c0_i32_0 = arith.constant 0 : i32
    %c0_i32_1 = arith.constant 0 : i32
    return %c0_i32, %c0_i32_0 : i32, i32
  }
  func.func @transform_3(%arg0: i32) -> (i32, i32) {
    %c0_i32 = arith.constant 0 : i32
    %c0_i32_0 = arith.constant 0 : i32
    %c0_i32_1 = arith.constant 0 : i32
    return %c0_i32, %c0_i32_0 : i32, i32
  }
  func.func @transform_4(%arg0: i32) -> (i32, i32, i32) {
    %c0_i32 = arith.constant 0 : i32
    %c0_i32_0 = arith.constant 0 : i32
    %c0_i32_1 = arith.constant 0 : i32
    return %c0_i32, %arg0, %c0_i32_0 : i32, i32, i32
  }
}

</mosaic_0001>

<llo_original>
// kernel: bilstm_forward.1
$region0: #{bilstm_forward.1}
  #allocation0 [shape = 'u32[]', space=smem, size = 0x4, offset = 0x4, fixed_abs, tag = 'smem constant byte address 0x4 - core index']
  #allocation1 [shape = 'u32[144,128]{1,0:T(1,128)}', space=vmem, size = 0x12000, scoped, tag = 'internal scratch']
  #allocation2 [shape = 'f32[8,2,256]{2,1,0:T(2,128)}', space=vmem, size = 0x4000, scoped, tag = 'scratch operand']
  %s0 = inlined_call_operand.vmem [shape: bf16[8,2,32], index: 0, kind: input, shape index: {}]
  %s1 = inlined_call_operand.vmem [shape: bf16[32,256], index: 1, kind: input, shape index: {}]
  %s2 = inlined_call_operand.vmem [shape: bf16[64,256], index: 2, kind: input, shape index: {}]
  %s3 = inlined_call_operand.vmem [shape: f32[1,256], index: 3, kind: input, shape index: {}]
  %s4 = inlined_call_operand.vmem [shape: f32[8,2,64], index: 4, kind: output, shape index: {}]
  %s5 = sld [smem:[#allocation0]]
  $region26: #{bilstm_forward.1} parent=0
    _
  %s7 = ssub.s32 1, %s5
  %s8 = scalar_select 0, %s7, %s5
  // Predicated region
  $region2: #{bilstm_forward.1} parent=0 // pred_check
    _
  $region3: #{bilstm_forward.1} parent=0 // pred_check_branch
    %10 = sbr.rel (0) target = $region5
  $region4: #{bilstm_forward.1} parent=0 // pred_region
    _
  $region5: #{bilstm_forward.1} parent=0 // pred_fallthru
    _
  // Predicated region
  $region6: #{bilstm_forward.1} parent=0 // pred_check
    _
  $region7: #{bilstm_forward.1} parent=0 // pred_check_branch
    %12 = sbr.rel (0) target = $region9
  $region8: #{bilstm_forward.1} parent=0 // pred_region
    _
  $region9: #{bilstm_forward.1} parent=0 // pred_fallthru
    _
  // Predicated region
  $region10: #{bilstm_forward.1} parent=0 // pred_check
    _
  $region11: #{bilstm_forward.1} parent=0 // pred_check_branch
    %14 = sbr.rel (0) target = $region13
  $region12: #{bilstm_forward.1} parent=0 // pred_region
    _
  $region13: #{bilstm_forward.1} parent=0 // pred_fallthru
    _
  // Predicated region
  $region14: #{bilstm_forward.1} parent=0 // pred_check
    _
  $region15: #{bilstm_forward.1} parent=0 // pred_check_branch
    %16 = sbr.rel (0) target = $region17
  $region16: #{bilstm_forward.1} parent=0 // pred_region
    _
  $region17: #{bilstm_forward.1} parent=0 // pred_fallthru
    _
  %v18 = vld [vmem:[%s0] sm:$0x1]
  %v19 = vld [vmem:[%s0 + $0x1] sm:$0x1]
  %v20 = vld [vmem:[%s0 + $0x2] sm:$0x1]
  %v21 = vld [vmem:[%s0 + $0x3] sm:$0x1]
  %v22 = vld [vmem:[%s0 + $0x4] sm:$0x1]
  %v23 = vld [vmem:[%s0 + $0x5] sm:$0x1]
  %v24 = vld [vmem:[%s0 + $0x6] sm:$0x1]
  %v25 = vld [vmem:[%s0 + $0x7] sm:$0x1]
  %v26 = vld [vmem:[%s1] sm:$0xff]
  %v27 = vld [vmem:[%s1 + $0x8] sm:$0xff]
  %v28 = vld [vmem:[%s1 + $0x10] sm:$0xff]
  %v29 = vld [vmem:[%s1 + $0x18] sm:$0xff]
  %v30 = vld [vmem:[%s3] sm:$0x3]
  %v32 = vlaneseq
  %v33 = vshrl.u32 %v32, 7
  %v34 = vsub.s32 0, %v33
  %v35 = vrot.slane %v30, %v34
  %v36 = vlaneseq
  %v37 = vshrl.u32 %v36, 7
  %v38 = vsub.s32 1, %v37
  %v39 = vrot.slane %v30, %v38
  %v40 = vcombine.low %v35, %v39
  %v42 = vunpack.c.l.s4 1983009808
  %v43 = vunpack.c.0.s8 %v42
  %v44 = vlaneseq
  %v45 = vshrl.u32 %v44, 7
  %v46 = vsub.s32 %v43, %v45
  %v47 = vrot.slane %v40, %v46
  %v56 = vcombine.low %v18, %v19
  %v57 = vcombine.low %v20, %v21
  %v58 = vcombine.low %v22, %v23
  %v59 = vcombine.low %v24, %v25
  %v61 = vunpack.c.l.s4 1966171168
  %v62 = vunpack.c.0.s8 %v61
  %v63 = vlaneseq
  %v64 = vshrl.u32 %v63, 7
  %v65 = vsub.s32 %v62, %v64
  %v66 = vrot.slane %v56, %v65
  %v68 = vunpack.c.l.s4 1966171168
  %v69 = vunpack.c.0.s8 %v68
  %v70 = vlaneseq
  %v71 = vshrl.u32 %v70, 7
  %v72 = vsub.s32 %v69, %v71
  %v73 = vrot.slane %v57, %v72
  %v75 = vunpack.c.l.s4 1966171168
  %v76 = vunpack.c.0.s8 %v75
  %v77 = vlaneseq
  %v78 = vshrl.u32 %v77, 7
  %v79 = vsub.s32 %v76, %v78
  %v80 = vrot.slane %v58, %v79
  %v82 = vunpack.c.l.s4 1966171168
  %v83 = vunpack.c.0.s8 %v82
  %v84 = vlaneseq
  %v85 = vshrl.u32 %v84, 7
  %v86 = vsub.s32 %v83, %v85
  %v87 = vrot.slane %v59, %v86
  %v88 = vcombine.low %v66, %v73
  %v89 = vcombine.low %v80, %v87
  %v91 = vunpack.c.l.s4 1966171168
  %v92 = vunpack.c.0.s8 %v91
  %v93 = vlaneseq
  %v94 = vshrl.u32 %v93, 7
  %v95 = vsub.s32 %v92, %v94
  %v96 = vrot.slane %v88, %v95
  %v98 = vunpack.c.l.s4 1966171168
  %v99 = vunpack.c.0.s8 %v98
  %v100 = vlaneseq
  %v101 = vshrl.u32 %v100, 7
  %v102 = vsub.s32 %v99, %v101
  %v103 = vrot.slane %v89, %v102
  %v104 = vcombine.low %v96, %v103
  %v109 = vunpack.c.l.b16 %v26
  %v110 = vunpack.c.h.b16 %v26
  %v111 = vunpack.c.l.b16 %v27
  %v112 = vunpack.c.h.b16 %v27
  %v113 = vunpack.c.l.b16 %v28
  %v114 = vunpack.c.h.b16 %v28
  %v115 = vunpack.c.l.b16 %v29
  %v116 = vunpack.c.h.b16 %v29
  %v117 = vpack.c.b16 %v111, %v109
  %v118 = vpack.c.b16 %v112, %v110
  %v119 = vpack.c.b16 %v115, %v113
  %v120 = vpack.c.b16 %v116, %v114
  %v125 = vcombine.low %v47, %v47
  %v127 = vunpack.c.l.s4 1983009808
  %v128 = vunpack.c.0.s8 %v127
  %v129 = vlaneseq
  %v130 = vshrl.u32 %v129, 7
  %v131 = vsub.s32 %v128, %v130
  %v132 = vrot.slane %v125, %v131
  %v133 = vcombine.low %v132, %v132
  %v134 = vcombine.high %v132, %v132
  %vm137 = vcmask 261120
  %v139 = vsel %vm137, %v104, 0
  %141 = vmatprep.subr.bf16.mxu0 0
  %142 = vmatpush1.bf16.msra.mxu0 0
  %143 = vmatprep.subr.bf16.mxu0 0
  %144 = vmatpush1.bf16.msra.mxu0 0
  %145 = vmatprep.subr.bf16.mxu0 0
  %146 = vmatpush1.bf16.msra.mxu0 0
  %147 = vmatprep.subr.bf16.mxu0 0
  %148 = vmatpush1.bf16.msra.mxu0 0
  %149 = vmatprep.subr.bf16.mxu0 0
  %150 = vmatpush1.bf16.msra.mxu0 0
  %151 = vmatprep.subr.bf16.mxu0 0
  %152 = vmatpush1.bf16.msra.mxu0 0
  %153 = vmatprep.subr.bf16.mxu0 %v120
  %154 = vmatpush1.bf16.msra.mxu0 %v119
  %155 = vmatprep.subr.bf16.mxu0 %v118
  %156 = vmatpush1.bf16.msra.mxu0 %v117
  %157 = vmatprep.subr.bf16.mxu0 0
  %158 = vmatpush2.bf16.msra.mxu0 0
  %159 = vmatprep.subr.bf16.mxu0 0
  %160 = vmatpush2.bf16.msra.mxu0 0
  %161 = vmatprep.subr.bf16.mxu0 0
  %162 = vmatpush2.bf16.msra.mxu0 0
  %163 = vmatprep.subr.bf16.mxu0 0
  %164 = vmatpush2.bf16.msra.mxu0 0
  %165 = vmatprep.subr.bf16.mxu0 0
  %166 = vmatpush2.bf16.msra.mxu0 0
  %167 = vmatprep.subr.bf16.mxu0 0
  %168 = vmatpush2.bf16.msra.mxu0 0
  %169 = vmatprep.subr.bf16.mxu0 0
  %170 = vmatpush2.bf16.msra.mxu0 0
  %171 = vmatprep.subr.bf16.mxu0 0
  %172 = vmatpush2.bf16.msra.mxu0 0
  %173 = vmatprep.mubr.bf16.mxu0 0
  %174 = vmatmul.mubr.bf16.gmra.mxu0 %v139
  %v175 = vpop.f32.mrf.mxu0
  %v176 = vadd.f32 %v133, %v175
  %v177 = vpop.f32.mrf.mxu0
  %v178 = vadd.f32 %v134, %v177
  %v179 = vpop.f32.mrf.mxu0
  %v180 = vadd.f32 %v133, %v179
  %v181 = vpop.f32.mrf.mxu0
  %v182 = vadd.f32 %v134, %v181
  %183 = vdwg.mxu0
  %v188 = vcombine.low %v176, %v178
  %v189 = vcombine.high %v176, %v178
  %v191 = vunpack.c.l.s4 1983009808
  %v192 = vunpack.c.0.s8 %v191
  %v193 = vlaneseq
  %v194 = vshrl.u32 %v193, 7
  %v195 = vsub.s32 %v192, %v194
  %v196 = vrot.slane %v188, %v195
  %v198 = vunpack.c.l.s4 1983009808
  %v199 = vunpack.c.0.s8 %v198
  %v200 = vlaneseq
  %v201 = vshrl.u32 %v200, 7
  %v202 = vsub.s32 %v199, %v201
  %v203 = vrot.slane %v189, %v202
  %v204 = vcombine.high %v196, %v196
  %v205 = vcombine.high %v203, %v203
  %v206 = vcombine.low %v180, %v182
  %v207 = vcombine.high %v180, %v182
  %v209 = vunpack.c.l.s4 1983009808
  %v210 = vunpack.c.0.s8 %v209
  %v211 = vlaneseq
  %v212 = vshrl.u32 %v211, 7
  %v213 = vsub.s32 %v210, %v212
  %v214 = vrot.slane %v206, %v213
  %v216 = vunpack.c.l.s4 1983009808
  %v217 = vunpack.c.0.s8 %v216
  %v218 = vlaneseq
  %v219 = vshrl.u32 %v218, 7
  %v220 = vsub.s32 %v217, %v219
  %v221 = vrot.slane %v207, %v220
  %v222 = vcombine.high %v214, %v214
  %v223 = vcombine.high %v221, %v221
  %232 = vst [vmem:[#allocation2] sm:$0xf] %v196
  %233 = vst [vmem:[#allocation2 + $0x4] sm:$0xf] %v204
  %234 = vst [vmem:[#allocation2 + $0x8] sm:$0xf] %v203
  %235 = vst [vmem:[#allocation2 + $0xc] sm:$0xf] %v205
  %236 = vst [vmem:[#allocation2 + $0x10] sm:$0xf] %v214
  %237 = vst [vmem:[#allocation2 + $0x14] sm:$0xf] %v222
  %238 = vst [vmem:[#allocation2 + $0x18] sm:$0xf] %v221
  %239 = vst [vmem:[#allocation2 + $0x1c] sm:$0xf] %v223
  %v240 = vld [vmem:[%s2] sm:$0xff]
  %v241 = vld [vmem:[%s2 + $0x8] sm:$0xff]
  %v242 = vld [vmem:[%s2 + $0x10] sm:$0xff]
  %v243 = vld [vmem:[%s2 + $0x18] sm:$0xff]
  %v244 = vld [vmem:[%s2 + $0x20] sm:$0xff]
  %v245 = vld [vmem:[%s2 + $0x28] sm:$0xff]
  %v246 = vld [vmem:[%s2 + $0x30] sm:$0xff]
  %v247 = vld [vmem:[%s2 + $0x38] sm:$0xff]
  %v256 = vunpack.c.l.b16 %v240
  %v257 = vunpack.c.h.b16 %v240
  %v258 = vunpack.c.l.b16 %v241
  %v259 = vunpack.c.h.b16 %v241
  %v260 = vunpack.c.l.b16 %v242
  %v261 = vunpack.c.h.b16 %v242
  %v262 = vunpack.c.l.b16 %v243
  %v263 = vunpack.c.h.b16 %v243
  %v264 = vunpack.c.l.b16 %v244
  %v265 = vunpack.c.h.b16 %v244
  %v266 = vunpack.c.l.b16 %v245
  %v267 = vunpack.c.h.b16 %v245
  %v268 = vunpack.c.l.b16 %v246
  %v269 = vunpack.c.h.b16 %v246
  %v270 = vunpack.c.l.b16 %v247
  %v271 = vunpack.c.h.b16 %v247
  %v272 = vpack.c.b16 %v258, %v256
  %v273 = vpack.c.b16 %v259, %v257
  %v274 = vpack.c.b16 %v262, %v260
  %v275 = vpack.c.b16 %v263, %v261
  %v276 = vpack.c.b16 %v266, %v264
  %v277 = vpack.c.b16 %v267, %v265
  %v278 = vpack.c.b16 %v270, %v268
  %v279 = vpack.c.b16 %v271, %v269
  %vm288 = vcmask 523264
  %v290 = vsel %vm288, 0, 0
  %292 = vmatprep.subr.bf16.mxu0 0
  %293 = vmatpush1.bf16.msra.mxu0 0
  %294 = vmatprep.subr.bf16.mxu0 0
  %295 = vmatpush1.bf16.msra.mxu0 0
  %296 = vmatprep.subr.bf16.mxu0 0
  %297 = vmatpush1.bf16.msra.mxu0 0
  %298 = vmatprep.subr.bf16.mxu0 0
  %299 = vmatpush1.bf16.msra.mxu0 0
  %300 = vmatprep.subr.bf16.mxu0 %v279
  %301 = vmatpush1.bf16.msra.mxu0 %v278
  %302 = vmatprep.subr.bf16.mxu0 %v277
  %303 = vmatpush1.bf16.msra.mxu0 %v276
  %304 = vmatprep.subr.bf16.mxu0 %v275
  %305 = vmatpush1.bf16.msra.mxu0 %v274
  %306 = vmatprep.subr.bf16.mxu0 %v273
  %307 = vmatpush1.bf16.msra.mxu0 %v272
  %308 = vmatprep.subr.bf16.mxu0 0
  %309 = vmatpush2.bf16.msra.mxu0 0
  %310 = vmatprep.subr.bf16.mxu0 0
  %311 = vmatpush2.bf16.msra.mxu0 0
  %312 = vmatprep.subr.bf16.mxu0 0
  %313 = vmatpush2.bf16.msra.mxu0 0
  %314 = vmatprep.subr.bf16.mxu0 0
  %315 = vmatpush2.bf16.msra.mxu0 0
  %316 = vmatprep.subr.bf16.mxu0 0
  %317 = vmatpush2.bf16.msra.mxu0 0
  %318 = vmatprep.subr.bf16.mxu0 0
  %319 = vmatpush2.bf16.msra.mxu0 0
  %320 = vmatprep.subr.bf16.mxu0 0
  %321 = vmatpush2.bf16.msra.mxu0 0
  %322 = vmatprep.subr.bf16.mxu0 0
  %323 = vmatpush2.bf16.msra.mxu0 0
  %324 = vmatprep.mubr.bf16.mxu0 0
  %325 = vmatmul.mubr.bf16.gmra.mxu0 %v290
  %v326 = vpop.f32.mrf.mxu0
  %v327 = vadd.f32 0.0, %v326
  %v328 = vpop.f32.mrf.mxu0
  %v329 = vadd.f32 0.0, %v328
  %v330 = vpop.f32.mrf.mxu0
  %v331 = vpop.f32.mrf.mxu0
  %332 = vdwg.mxu0
  %v333 = vld [vmem:[#allocation2] sm:$0x3]
  %v334 = vadd.f32 %v333, %v327
  %s335 = scalar_lea.vmem [#allocation2], 28
  %v336 = vld [vmem:[%s335 + $0x2] sm:$0x3]
  %v337 = vadd.f32 %v336, %v329
  %v338 = vxor.u32 %v334, 2147483648
  %v339 = vmul.f32 %v338, 1.442695
  %v340 = vpow.pop %v339
  %v341 = vadd.f32 %v340, 1.0
  %v342 = vrcp.pop %v341
  %v343 = vmul.f32 1.0, %v342
  %v344 = vtanh.pop %v334
  %v345 = vmul.f32 %v343, 0.0
  %347 = vrot.lane.b32.xlu0 %v344, 32
  %v348 = vpop.permute.xlu0 %347
  %v350 = vmul.f32 %v343, %v348
  %352 = vrot.lane.b32.xlu0 %v350, 32
  %v353 = vpop.permute.xlu0 %352
  %v355 = vadd.f32 %v345, %v353
  %v356 = vtanh.pop %v355
  %358 = vrot.lane.b32.xlu0 %v356, 32
  %v359 = vpop.permute.xlu0 %358
  %v361 = vmul.f32 %v343, %v359
  %v362 = vxor.u32 %v337, 2147483648
  %v363 = vmul.f32 %v362, 1.442695
  %v364 = vpow.pop %v363
  %v365 = vadd.f32 %v364, 1.0
  %v366 = vrcp.pop %v365
  %v367 = vmul.f32 1.0, %v366
  %v368 = vtanh.pop %v337
  %v369 = vmul.f32 %v367, 0.0
  %371 = vrot.lane.b32.xlu0 %v368, 32
  %v372 = vpop.permute.xlu0 %371
  %v374 = vmul.f32 %v367, %v372
  %376 = vrot.lane.b32.xlu0 %v374, 32
  %v377 = vpop.permute.xlu0 %376
  %v379 = vadd.f32 %v369, %v377
  %v380 = vtanh.pop %v379
  %382 = vrot.lane.b32.xlu0 %v380, 32
  %v383 = vpop.permute.xlu0 %382
  %v385 = vmul.f32 %v367, %v383
  %v388 = vunpack.c.l.s4 1983009808
  %v389 = vunpack.c.0.s8 %v388
  %v390 = vlaneseq
  %v391 = vshrl.u32 %v390, 7
  %v392 = vsub.s32 %v389, %v391
  %v393 = vrot.slane %v361, %v392
  %394 = vrot.lane.b32.xlu0 %v393, 64
  %v395 = vpop.permute.xlu0 %394
  %vm397 = vcmask 254976
  %398 = vst.msk [vmem:[%s4] sm:$0x3] %vm397, %v395
  %v401 = vunpack.c.l.s4 1983009808
  %v402 = vunpack.c.0.s8 %v401
  %v403 = vlaneseq
  %v404 = vshrl.u32 %v403, 7
  %v405 = vsub.s32 %v402, %v404
  %v406 = vrot.slane %v385, %v405
  %407 = vrot.lane.b32.xlu0 %v406, 96
  %v408 = vpop.permute.xlu0 %407
  %s410 = scalar_lea.vmem %s4, 14
  %vm411 = vcmask 517376
  %412 = vst.msk [vmem:[%s410] sm:$0x3] %vm411, %v408
  %v413 = vsel %vm137, %v395, %v408
  %v414 = vpack.c.bf16 %v413, %v413
  %v415 = vld [vmem:[%s2] sm:$0xff]
  %v416 = vld [vmem:[%s2 + $0x8] sm:$0xff]
  %v417 = vld [vmem:[%s2 + $0x10] sm:$0xff]
  %v418 = vld [vmem:[%s2 + $0x18] sm:$0xff]
  %v419 = vld [vmem:[%s2 + $0x20] sm:$0xff]
  %v420 = vld [vmem:[%s2 + $0x28] sm:$0xff]
  %v421 = vld [vmem:[%s2 + $0x30] sm:$0xff]
  %v422 = vld [vmem:[%s2 + $0x38] sm:$0xff]
  %v431 = vunpack.c.l.b16 %v415
  %v432 = vunpack.c.h.b16 %v415
  %v433 = vunpack.c.l.b16 %v416
  %v434 = vunpack.c.h.b16 %v416
  %v435 = vunpack.c.l.b16 %v417
  %v436 = vunpack.c.h.b16 %v417
  %v437 = vunpack.c.l.b16 %v418
  %v438 = vunpack.c.h.b16 %v418
  %v439 = vunpack.c.l.b16 %v419
  %v440 = vunpack.c.h.b16 %v419
  %v441 = vunpack.c.l.b16 %v420
  %v442 = vunpack.c.h.b16 %v420
  %v443 = vunpack.c.l.b16 %v421
  %v444 = vunpack.c.h.b16 %v421
  %v445 = vunpack.c.l.b16 %v422
  %v446 = vunpack.c.h.b16 %v422
  %v447 = vpack.c.b16 %v433, %v431
  %v448 = vpack.c.b16 %v434, %v432
  %v449 = vpack.c.b16 %v437, %v435
  %v450 = vpack.c.b16 %v438, %v436
  %v451 = vpack.c.b16 %v441, %v439
  %v452 = vpack.c.b16 %v442, %v440
  %v453 = vpack.c.b16 %v445, %v443
  %v454 = vpack.c.b16 %v446, %v444
  %v464 = vsel %vm288, %v414, 0
  %466 = vmatprep.subr.bf16.mxu0 0
  %467 = vmatpush1.bf16.msra.mxu0 0
  %468 = vmatprep.subr.bf16.mxu0 0
  %469 = vmatpush1.bf16.msra.mxu0 0
  %470 = vmatprep.subr.bf16.mxu0 0
  %471 = vmatpush1.bf16.msra.mxu0 0
  %472 = vmatprep.subr.bf16.mxu0 0
  %473 = vmatpush1.bf16.msra.mxu0 0
  %474 = vmatprep.subr.bf16.mxu0 %v454
  %475 = vmatpush1.bf16.msra.mxu0 %v453
  %476 = vmatprep.subr.bf16.mxu0 %v452
  %477 = vmatpush1.bf16.msra.mxu0 %v451
  %478 = vmatprep.subr.bf16.mxu0 %v450
  %479 = vmatpush1.bf16.msra.mxu0 %v449
  %480 = vmatprep.subr.bf16.mxu0 %v448
  %481 = vmatpush1.bf16.msra.mxu0 %v447
  %482 = vmatprep.subr.bf16.mxu0 0
  %483 = vmatpush2.bf16.msra.mxu0 0
  %484 = vmatprep.subr.bf16.mxu0 0
  %485 = vmatpush2.bf16.msra.mxu0 0
  %486 = vmatprep.subr.bf16.mxu0 0
  %487 = vmatpush2.bf16.msra.mxu0 0
  %488 = vmatprep.subr.bf16.mxu0 0
  %489 = vmatpush2.bf16.msra.mxu0 0
  %490 = vmatprep.subr.bf16.mxu0 0
  %491 = vmatpush2.bf16.msra.mxu0 0
  %492 = vmatprep.subr.bf16.mxu0 0
  %493 = vmatpush2.bf16.msra.mxu0 0
  %494 = vmatprep.subr.bf16.mxu0 0
  %495 = vmatpush2.bf16.msra.mxu0 0
  %496 = vmatprep.subr.bf16.mxu0 0
  %497 = vmatpush2.bf16.msra.mxu0 0
  %498 = vmatprep.mubr.bf16.mxu0 0
  %499 = vmatmul.mubr.bf16.gmra.mxu0 %v464
  %v500 = vpop.f32.mrf.mxu0
  %v501 = vadd.f32 0.0, %v500
  %v502 = vpop.f32.mrf.mxu0
  %v503 = vadd.f32 0.0, %v502
  %v504 = vpop.f32.mrf.mxu0
  %v505 = vpop.f32.mrf.mxu0
  %506 = vdwg.mxu0
  %s507 = scalar_lea.vmem [#allocation2], 4
  %v508 = vld [vmem:[%s507] sm:$0x3]
  %v509 = vadd.f32 %v508, %v501
  %s510 = scalar_lea.vmem [#allocation2], 24
  %v511 = vld [vmem:[%s510 + $0x2] sm:$0x3]
  %v512 = vadd.f32 %v511, %v503
  %v513 = vxor.u32 %v509, 2147483648
  %v514 = vmul.f32 %v513, 1.442695
  %v515 = vpow.pop %v514
  %v516 = vadd.f32 %v515, 1.0
  %v517 = vrcp.pop %v516
  %v518 = vmul.f32 1.0, %v517
  %v519 = vtanh.pop %v509
  %v520 = vmul.f32 %v518, %v355
  %522 = vrot.lane.b32.xlu0 %v519, 32
  %v523 = vpop.permute.xlu0 %522
  %v525 = vmul.f32 %v518, %v523
  %527 = vrot.lane.b32.xlu0 %v525, 32
  %v528 = vpop.permute.xlu0 %527
  %v530 = vadd.f32 %v520, %v528
  %v531 = vtanh.pop %v530
  %533 = vrot.lane.b32.xlu0 %v531, 32
  %v534 = vpop.permute.xlu0 %533
  %v536 = vmul.f32 %v518, %v534
  %v537 = vxor.u32 %v512, 2147483648
  %v538 = vmul.f32 %v537, 1.442695
  %v539 = vpow.pop %v538
  %v540 = vadd.f32 %v539, 1.0
  %v541 = vrcp.pop %v540
  %v542 = vmul.f32 1.0, %v541
  %v543 = vtanh.pop %v512
  %v544 = vmul.f32 %v542, %v379
  %546 = vrot.lane.b32.xlu0 %v543, 32
  %v547 = vpop.permute.xlu0 %546
  %v549 = vmul.f32 %v542, %v547
  %551 = vrot.lane.b32.xlu0 %v549, 32
  %v552 = vpop.permute.xlu0 %551
  %v554 = vadd.f32 %v544, %v552
  %v555 = vtanh.pop %v554
  %557 = vrot.lane.b32.xlu0 %v555, 32
  %v558 = vpop.permute.xlu0 %557
  %v560 = vmul.f32 %v542, %v558
  %v563 = vunpack.c.l.s4 1983009808
  %v564 = vunpack.c.0.s8 %v563
  %v565 = vlaneseq
  %v566 = vshrl.u32 %v565, 7
  %v567 = vsub.s32 %v564, %v566
  %v568 = vrot.slane %v536, %v567
  %569 = vrot.lane.b32.xlu0 %v568, 64
  %v570 = vpop.permute.xlu0 %569
  %s572 = scalar_lea.vmem %s4, 2
  %573 = vst.msk [vmem:[%s572] sm:$0x3] %vm397, %v570
  %v576 = vunpack.c.l.s4 1983009808
  %v577 = vunpack.c.0.s8 %v576
  %v578 = vlaneseq
  %v579 = vshrl.u32 %v578, 7
  %v580 = vsub.s32 %v577, %v579
  %v581 = vrot.slane %v560, %v580
  %582 = vrot.lane.b32.xlu0 %v581, 96
  %v583 = vpop.permute.xlu0 %582
  %s585 = scalar_lea.vmem %s4, 12
  %586 = vst.msk [vmem:[%s585] sm:$0x3] %vm411, %v583
  %v587 = vsel %vm137, %v570, %v583
  %v588 = vpack.c.bf16 %v587, %v587
  %v589 = vld [vmem:[%s2] sm:$0xff]
  %v590 = vld [vmem:[%s2 + $0x8] sm:$0xff]
  %v591 = vld [vmem:[%s2 + $0x10] sm:$0xff]
  %v592 = vld [vmem:[%s2 + $0x18] sm:$0xff]
  %v593 = vld [vmem:[%s2 + $0x20] sm:$0xff]
  %v594 = vld [vmem:[%s2 + $0x28] sm:$0xff]
  %v595 = vld [vmem:[%s2 + $0x30] sm:$0xff]
  %v596 = vld [vmem:[%s2 + $0x38] sm:$0xff]
  %v605 = vunpack.c.l.b16 %v589
  %v606 = vunpack.c.h.b16 %v589
  %v607 = vunpack.c.l.b16 %v590
  %v608 = vunpack.c.h.b16 %v590
  %v609 = vunpack.c.l.b16 %v591
  %v610 = vunpack.c.h.b16 %v591
  %v611 = vunpack.c.l.b16 %v592
  %v612 = vunpack.c.h.b16 %v592
  %v613 = vunpack.c.l.b16 %v593
  %v614 = vunpack.c.h.b16 %v593
  %v615 = vunpack.c.l.b16 %v594
  %v616 = vunpack.c.h.b16 %v594
  %v617 = vunpack.c.l.b16 %v595
  %v618 = vunpack.c.h.b16 %v595
  %v619 = vunpack.c.l.b16 %v596
  %v620 = vunpack.c.h.b16 %v596
  %v621 = vpack.c.b16 %v607, %v605
  %v622 = vpack.c.b16 %v608, %v606
  %v623 = vpack.c.b16 %v611, %v609
  %v624 = vpack.c.b16 %v612, %v610
  %v625 = vpack.c.b16 %v615, %v613
  %v626 = vpack.c.b16 %v616, %v614
  %v627 = vpack.c.b16 %v619, %v617
  %v628 = vpack.c.b16 %v620, %v618
  %v638 = vsel %vm288, %v588, 0
  %640 = vmatprep.subr.bf16.mxu0 0
  %641 = vmatpush1.bf16.msra.mxu0 0
  %642 = vmatprep.subr.bf16.mxu0 0
  %643 = vmatpush1.bf16.msra.mxu0 0
  %644 = vmatprep.subr.bf16.mxu0 0
  %645 = vmatpush1.bf16.msra.mxu0 0
  %646 = vmatprep.subr.bf16.mxu0 0
  %647 = vmatpush1.bf16.msra.mxu0 0
  %648 = vmatprep.subr.bf16.mxu0 %v628
  %649 = vmatpush1.bf16.msra.mxu0 %v627
  %650 = vmatprep.subr.bf16.mxu0 %v626
  %651 = vmatpush1.bf16.msra.mxu0 %v625
  %652 = vmatprep.subr.bf16.mxu0 %v624
  %653 = vmatpush1.bf16.msra.mxu0 %v623
  %654 = vmatprep.subr.bf16.mxu0 %v622
  %655 = vmatpush1.bf16.msra.mxu0 %v621
  %656 = vmatprep.subr.bf16.mxu0 0
  %657 = vmatpush2.bf16.msra.mxu0 0
  %658 = vmatprep.subr.bf16.mxu0 0
  %659 = vmatpush2.bf16.msra.mxu0 0
  %660 = vmatprep.subr.bf16.mxu0 0
  %661 = vmatpush2.bf16.msra.mxu0 0
  %662 = vmatprep.subr.bf16.mxu0 0
  %663 = vmatpush2.bf16.msra.mxu0 0
  %664 = vmatprep.subr.bf16.mxu0 0
  %665 = vmatpush2.bf16.msra.mxu0 0
  %666 = vmatprep.subr.bf16.mxu0 0
  %667 = vmatpush2.bf16.msra.mxu0 0
  %668 = vmatprep.subr.bf16.mxu0 0
  %669 = vmatpush2.bf16.msra.mxu0 0
  %670 = vmatprep.subr.bf16.mxu0 0
  %671 = vmatpush2.bf16.msra.mxu0 0
  %672 = vmatprep.mubr.bf16.mxu0 0
  %673 = vmatmul.mubr.bf16.gmra.mxu0 %v638
  %v674 = vpop.f32.mrf.mxu0
  %v675 = vadd.f32 0.0, %v674
  %v676 = vpop.f32.mrf.mxu0
  %v677 = vadd.f32 0.0, %v676
  %v678 = vpop.f32.mrf.mxu0
  %v679 = vpop.f32.mrf.mxu0
  %680 = vdwg.mxu0
  %s681 = scalar_lea.vmem [#allocation2], 8
  %v682 = vld [vmem:[%s681] sm:$0x3]
  %v683 = vadd.f32 %v682, %v675
  %s684 = scalar_lea.vmem [#allocation2], 20
  %v685 = vld [vmem:[%s684 + $0x2] sm:$0x3]
  %v686 = vadd.f32 %v685, %v677
  %v687 = vxor.u32 %v683, 2147483648
  %v688 = vmul.f32 %v687, 1.442695
  %v689 = vpow.pop %v688
  %v690 = vadd.f32 %v689, 1.0
  %v691 = vrcp.pop %v690
  %v692 = vmul.f32 1.0, %v691
  %v693 = vtanh.pop %v683
  %v694 = vmul.f32 %v692, %v530
  %696 = vrot.lane.b32.xlu0 %v693, 32
  %v697 = vpop.permute.xlu0 %696
  %v699 = vmul.f32 %v692, %v697
  %701 = vrot.lane.b32.xlu0 %v699, 32
  %v702 = vpop.permute.xlu0 %701
  %v704 = vadd.f32 %v694, %v702
  %v705 = vtanh.pop %v704
  %707 = vrot.lane.b32.xlu0 %v705, 32
  %v708 = vpop.permute.xlu0 %707
  %v710 = vmul.f32 %v692, %v708
  %v711 = vxor.u32 %v686, 2147483648
  %v712 = vmul.f32 %v711, 1.442695
  %v713 = vpow.pop %v712
  %v714 = vadd.f32 %v713, 1.0
  %v715 = vrcp.pop %v714
  %v716 = vmul.f32 1.0, %v715
  %v717 = vtanh.pop %v686
  %v718 = vmul.f32 %v716, %v554
  %720 = vrot.lane.b32.xlu0 %v717, 32
  %v721 = vpop.permute.xlu0 %720
  %v723 = vmul.f32 %v716, %v721
  %725 = vrot.lane.b32.xlu0 %v723, 32
  %v726 = vpop.permute.xlu0 %725
  %v728 = vadd.f32 %v718, %v726
  %v729 = vtanh.pop %v728
  %731 = vrot.lane.b32.xlu0 %v729, 32
  %v732 = vpop.permute.xlu0 %731
  %v734 = vmul.f32 %v716, %v732
  %v737 = vunpack.c.l.s4 1983009808
  %v738 = vunpack.c.0.s8 %v737
  %v739 = vlaneseq
  %v740 = vshrl.u32 %v739, 7
  %v741 = vsub.s32 %v738, %v740
  %v742 = vrot.slane %v710, %v741
  %743 = vrot.lane.b32.xlu0 %v742, 64
  %v744 = vpop.permute.xlu0 %743
  %s746 = scalar_lea.vmem %s4, 4
  %747 = vst.msk [vmem:[%s746] sm:$0x3] %vm397, %v744
  %v750 = vunpack.c.l.s4 1983009808
  %v751 = vunpack.c.0.s8 %v750
  %v752 = vlaneseq
  %v753 = vshrl.u32 %v752, 7
  %v754 = vsub.s32 %v751, %v753
  %v755 = vrot.slane %v734, %v754
  %756 = vrot.lane.b32.xlu0 %v755, 96
  %v757 = vpop.permute.xlu0 %756
  %s759 = scalar_lea.vmem %s4, 10
  %760 = vst.msk [vmem:[%s759] sm:$0x3] %vm411, %v757
  %v761 = vsel %vm137, %v744, %v757
  %v762 = vpack.c.bf16 %v761, %v761
  %v763 = vld [vmem:[%s2] sm:$0xff]
  %v764 = vld [vmem:[%s2 + $0x8] sm:$0xff]
  %v765 = vld [vmem:[%s2 + $0x10] sm:$0xff]
  %v766 = vld [vmem:[%s2 + $0x18] sm:$0xff]
  %v767 = vld [vmem:[%s2 + $0x20] sm:$0xff]
  %v768 = vld [vmem:[%s2 + $0x28] sm:$0xff]
  %v769 = vld [vmem:[%s2 + $0x30] sm:$0xff]
  %v770 = vld [vmem:[%s2 + $0x38] sm:$0xff]
  %v779 = vunpack.c.l.b16 %v763
  %v780 = vunpack.c.h.b16 %v763
  %v781 = vunpack.c.l.b16 %v764
  %v782 = vunpack.c.h.b16 %v764
  %v783 = vunpack.c.l.b16 %v765
  %v784 = vunpack.c.h.b16 %v765
  %v785 = vunpack.c.l.b16 %v766
  %v786 = vunpack.c.h.b16 %v766
  %v787 = vunpack.c.l.b16 %v767
  %v788 = vunpack.c.h.b16 %v767
  %v789 = vunpack.c.l.b16 %v768
  %v790 = vunpack.c.h.b16 %v768
  %v791 = vunpack.c.l.b16 %v769
  %v792 = vunpack.c.h.b16 %v769
  %v793 = vunpack.c.l.b16 %v770
  %v794 = vunpack.c.h.b16 %v770
  %v795 = vpack.c.b16 %v781, %v779
  %v796 = vpack.c.b16 %v782, %v780
  %v797 = vpack.c.b16 %v785, %v783
  %v798 = vpack.c.b16 %v786, %v784
  %v799 = vpack.c.b16 %v789, %v787
  %v800 = vpack.c.b16 %v790, %v788
  %v801 = vpack.c.b16 %v793, %v791
  %v802 = vpack.c.b16 %v794, %v792
  %v812 = vsel %vm288, %v762, 0
  %814 = vmatprep.subr.bf16.mxu0 0
  %815 = vmatpush1.bf16.msra.mxu0 0
  %816 = vmatprep.subr.bf16.mxu0 0
  %817 = vmatpush1.bf16.msra.mxu0 0
  %818 = vmatprep.subr.bf16.mxu0 0
  %819 = vmatpush1.bf16.msra.mxu0 0
  %820 = vmatprep.subr.bf16.mxu0 0
  %821 = vmatpush1.bf16.msra.mxu0 0
  %822 = vmatprep.subr.bf16.mxu0 %v802
  %823 = vmatpush1.bf16.msra.mxu0 %v801
  %824 = vmatprep.subr.bf16.mxu0 %v800
  %825 = vmatpush1.bf16.msra.mxu0 %v799
  %826 = vmatprep.subr.bf16.mxu0 %v798
  %827 = vmatpush1.bf16.msra.mxu0 %v797
  %828 = vmatprep.subr.bf16.mxu0 %v796
  %829 = vmatpush1.bf16.msra.mxu0 %v795
  %830 = vmatprep.subr.bf16.mxu0 0
  %831 = vmatpush2.bf16.msra.mxu0 0
  %832 = vmatprep.subr.bf16.mxu0 0
  %833 = vmatpush2.bf16.msra.mxu0 0
  %834 = vmatprep.subr.bf16.mxu0 0
  %835 = vmatpush2.bf16.msra.mxu0 0
  %836 = vmatprep.subr.bf16.mxu0 0
  %837 = vmatpush2.bf16.msra.mxu0 0
  %838 = vmatprep.subr.bf16.mxu0 0
  %839 = vmatpush2.bf16.msra.mxu0 0
  %840 = vmatprep.subr.bf16.mxu0 0
  %841 = vmatpush2.bf16.msra.mxu0 0
  %842 = vmatprep.subr.bf16.mxu0 0
  %843 = vmatpush2.bf16.msra.mxu0 0
  %844 = vmatprep.subr.bf16.mxu0 0
  %845 = vmatpush2.bf16.msra.mxu0 0
  %846 = vmatprep.mubr.bf16.mxu0 0
  %847 = vmatmul.mubr.bf16.gmra.mxu0 %v812
  %v848 = vpop.f32.mrf.mxu0
  %v849 = vadd.f32 0.0, %v848
  %v850 = vpop.f32.mrf.mxu0
  %v851 = vadd.f32 0.0, %v850
  %v852 = vpop.f32.mrf.mxu0
  %v853 = vpop.f32.mrf.mxu0
  %854 = vdwg.mxu0
  %s855 = scalar_lea.vmem [#allocation2], 12
  %v856 = vld [vmem:[%s855] sm:$0x3]
  %v857 = vadd.f32 %v856, %v849
  %s858 = scalar_lea.vmem [#allocation2], 16
  %v859 = vld [vmem:[%s858 + $0x2] sm:$0x3]
  %v860 = vadd.f32 %v859, %v851
  %v861 = vxor.u32 %v857, 2147483648
  %v862 = vmul.f32 %v861, 1.442695
  %v863 = vpow.pop %v862
  %v864 = vadd.f32 %v863, 1.0
  %v865 = vrcp.pop %v864
  %v866 = vmul.f32 1.0, %v865
  %v867 = vtanh.pop %v857
  %v868 = vmul.f32 %v866, %v704
  %870 = vrot.lane.b32.xlu0 %v867, 32
  %v871 = vpop.permute.xlu0 %870
  %v873 = vmul.f32 %v866, %v871
  %875 = vrot.lane.b32.xlu0 %v873, 32
  %v876 = vpop.permute.xlu0 %875
  %v878 = vadd.f32 %v868, %v876
  %v879 = vtanh.pop %v878
  %881 = vrot.lane.b32.xlu0 %v879, 32
  %v882 = vpop.permute.xlu0 %881
  %v884 = vmul.f32 %v866, %v882
  %v885 = vxor.u32 %v860, 2147483648
  %v886 = vmul.f32 %v885, 1.442695
  %v887 = vpow.pop %v886
  %v888 = vadd.f32 %v887, 1.0
  %v889 = vrcp.pop %v888
  %v890 = vmul.f32 1.0, %v889
  %v891 = vtanh.pop %v860
  %v892 = vmul.f32 %v890, %v728
  %894 = vrot.lane.b32.xlu0 %v891, 32
  %v895 = vpop.permute.xlu0 %894
  %v897 = vmul.f32 %v890, %v895
  %899 = vrot.lane.b32.xlu0 %v897, 32
  %v900 = vpop.permute.xlu0 %899
  %v902 = vadd.f32 %v892, %v900
  %v903 = vtanh.pop %v902
  %905 = vrot.lane.b32.xlu0 %v903, 32
  %v906 = vpop.permute.xlu0 %905
  %v908 = vmul.f32 %v890, %v906
  %v911 = vunpack.c.l.s4 1983009808
  %v912 = vunpack.c.0.s8 %v911
  %v913 = vlaneseq
  %v914 = vshrl.u32 %v913, 7
  %v915 = vsub.s32 %v912, %v914
  %v916 = vrot.slane %v884, %v915
  %917 = vrot.lane.b32.xlu0 %v916, 64
  %v918 = vpop.permute.xlu0 %917
  %s920 = scalar_lea.vmem %s4, 6
  %921 = vst.msk [vmem:[%s920] sm:$0x3] %vm397, %v918
  %v924 = vunpack.c.l.s4 1983009808
  %v925 = vunpack.c.0.s8 %v924
  %v926 = vlaneseq
  %v927 = vshrl.u32 %v926, 7
  %v928 = vsub.s32 %v925, %v927
  %v929 = vrot.slane %v908, %v928
  %930 = vrot.lane.b32.xlu0 %v929, 96
  %v931 = vpop.permute.xlu0 %930
  %s933 = scalar_lea.vmem %s4, 8
  %934 = vst.msk [vmem:[%s933] sm:$0x3] %vm411, %v931
  %v935 = vsel %vm137, %v918, %v931
  %v936 = vpack.c.bf16 %v935, %v935
  %v937 = vld [vmem:[%s2] sm:$0xff]
  %v938 = vld [vmem:[%s2 + $0x8] sm:$0xff]
  %v939 = vld [vmem:[%s2 + $0x10] sm:$0xff]
  %v940 = vld [vmem:[%s2 + $0x18] sm:$0xff]
  %v941 = vld [vmem:[%s2 + $0x20] sm:$0xff]
  %v942 = vld [vmem:[%s2 + $0x28] sm:$0xff]
  %v943 = vld [vmem:[%s2 + $0x30] sm:$0xff]
  %v944 = vld [vmem:[%s2 + $0x38] sm:$0xff]
  %v953 = vunpack.c.l.b16 %v937
  %v954 = vunpack.c.h.b16 %v937
  %v955 = vunpack.c.l.b16 %v938
  %v956 = vunpack.c.h.b16 %v938
  %v957 = vunpack.c.l.b16 %v939
  %v958 = vunpack.c.h.b16 %v939
  %v959 = vunpack.c.l.b16 %v940
  %v960 = vunpack.c.h.b16 %v940
  %v961 = vunpack.c.l.b16 %v941
  %v962 = vunpack.c.h.b16 %v941
  %v963 = vunpack.c.l.b16 %v942
  %v964 = vunpack.c.h.b16 %v942
  %v965 = vunpack.c.l.b16 %v943
  %v966 = vunpack.c.h.b16 %v943
  %v967 = vunpack.c.l.b16 %v944
  %v968 = vunpack.c.h.b16 %v944
  %v969 = vpack.c.b16 %v955, %v953
  %v970 = vpack.c.b16 %v956, %v954
  %v971 = vpack.c.b16 %v959, %v957
  %v972 = vpack.c.b16 %v960, %v958
  %v973 = vpack.c.b16 %v963, %v961
  %v974 = vpack.c.b16 %v964, %v962
  %v975 = vpack.c.b16 %v967, %v965
  %v976 = vpack.c.b16 %v968, %v966
  %v986 = vsel %vm288, %v936, 0
  %988 = vmatprep.subr.bf16.mxu0 0
  %989 = vmatpush1.bf16.msra.mxu0 0
  %990 = vmatprep.subr.bf16.mxu0 0
  %991 = vmatpush1.bf16.msra.mxu0 0
  %992 = vmatprep.subr.bf16.mxu0 0
  %993 = vmatpush1.bf16.msra.mxu0 0
  %994 = vmatprep.subr.bf16.mxu0 0
  %995 = vmatpush1.bf16.msra.mxu0 0
  %996 = vmatprep.subr.bf16.mxu0 %v976
  %997 = vmatpush1.bf16.msra.mxu0 %v975
  %998 = vmatprep.subr.bf16.mxu0 %v974
  %999 = vmatpush1.bf16.msra.mxu0 %v973
  %1000 = vmatprep.subr.bf16.mxu0 %v972
  %1001 = vmatpush1.bf16.msra.mxu0 %v971
  %1002 = vmatprep.subr.bf16.mxu0 %v970
  %1003 = vmatpush1.bf16.msra.mxu0 %v969
  %1004 = vmatprep.subr.bf16.mxu0 0
  %1005 = vmatpush2.bf16.msra.mxu0 0
  %1006 = vmatprep.subr.bf16.mxu0 0
  %1007 = vmatpush2.bf16.msra.mxu0 0
  %1008 = vmatprep.subr.bf16.mxu0 0
  %1009 = vmatpush2.bf16.msra.mxu0 0
  %1010 = vmatprep.subr.bf16.mxu0 0
  %1011 = vmatpush2.bf16.msra.mxu0 0
  %1012 = vmatprep.subr.bf16.mxu0 0
  %1013 = vmatpush2.bf16.msra.mxu0 0
  %1014 = vmatprep.subr.bf16.mxu0 0
  %1015 = vmatpush2.bf16.msra.mxu0 0
  %1016 = vmatprep.subr.bf16.mxu0 0
  %1017 = vmatpush2.bf16.msra.mxu0 0
  %1018 = vmatprep.subr.bf16.mxu0 0
  %1019 = vmatpush2.bf16.msra.mxu0 0
  %1020 = vmatprep.mubr.bf16.mxu0 0
  %1021 = vmatmul.mubr.bf16.gmra.mxu0 %v986
  %v1022 = vpop.f32.mrf.mxu0
  %v1023 = vadd.f32 0.0, %v1022
  %v1024 = vpop.f32.mrf.mxu0
  %v1025 = vadd.f32 0.0, %v1024
  %v1026 = vpop.f32.mrf.mxu0
  %v1027 = vpop.f32.mrf.mxu0
  %1028 = vdwg.mxu0
  %v1029 = vld [vmem:[%s858] sm:$0x3]
  %v1030 = vadd.f32 %v1029, %v1023
  %v1031 = vld [vmem:[%s855 + $0x2] sm:$0x3]
  %v1032 = vadd.f32 %v1031, %v1025
  %v1033 = vxor.u32 %v1030, 2147483648
  %v1034 = vmul.f32 %v1033, 1.442695
  %v1035 = vpow.pop %v1034
  %v1036 = vadd.f32 %v1035, 1.0
  %v1037 = vrcp.pop %v1036
  %v1038 = vmul.f32 1.0, %v1037
  %v1039 = vtanh.pop %v1030
  %v1040 = vmul.f32 %v1038, %v878
  %1042 = vrot.lane.b32.xlu0 %v1039, 32
  %v1043 = vpop.permute.xlu0 %1042
  %v1045 = vmul.f32 %v1038, %v1043
  %1047 = vrot.lane.b32.xlu0 %v1045, 32
  %v1048 = vpop.permute.xlu0 %1047
  %v1050 = vadd.f32 %v1040, %v1048
  %v1051 = vtanh.pop %v1050
  %1053 = vrot.lane.b32.xlu0 %v1051, 32
  %v1054 = vpop.permute.xlu0 %1053
  %v1056 = vmul.f32 %v1038, %v1054
  %v1057 = vxor.u32 %v1032, 2147483648
  %v1058 = vmul.f32 %v1057, 1.442695
  %v1059 = vpow.pop %v1058
  %v1060 = vadd.f32 %v1059, 1.0
  %v1061 = vrcp.pop %v1060
  %v1062 = vmul.f32 1.0, %v1061
  %v1063 = vtanh.pop %v1032
  %v1064 = vmul.f32 %v1062, %v902
  %1066 = vrot.lane.b32.xlu0 %v1063, 32
  %v1067 = vpop.permute.xlu0 %1066
  %v1069 = vmul.f32 %v1062, %v1067
  %1071 = vrot.lane.b32.xlu0 %v1069, 32
  %v1072 = vpop.permute.xlu0 %1071
  %v1074 = vadd.f32 %v1064, %v1072
  %v1075 = vtanh.pop %v1074
  %1077 = vrot.lane.b32.xlu0 %v1075, 32
  %v1078 = vpop.permute.xlu0 %1077
  %v1080 = vmul.f32 %v1062, %v1078
  %v1083 = vunpack.c.l.s4 1983009808
  %v1084 = vunpack.c.0.s8 %v1083
  %v1085 = vlaneseq
  %v1086 = vshrl.u32 %v1085, 7
  %v1087 = vsub.s32 %v1084, %v1086
  %v1088 = vrot.slane %v1056, %v1087
  %1089 = vrot.lane.b32.xlu0 %v1088, 64
  %v1090 = vpop.permute.xlu0 %1089
  %1092 = vst.msk [vmem:[%s933] sm:$0x3] %vm397, %v1090
  %v1095 = vunpack.c.l.s4 1983009808
  %v1096 = vunpack.c.0.s8 %v1095
  %v1097 = vlaneseq
  %v1098 = vshrl.u32 %v1097, 7
  %v1099 = vsub.s32 %v1096, %v1098
  %v1100 = vrot.slane %v1080, %v1099
  %1101 = vrot.lane.b32.xlu0 %v1100, 96
  %v1102 = vpop.permute.xlu0 %1101
  %1104 = vst.msk [vmem:[%s920] sm:$0x3] %vm411, %v1102
  %v1105 = vsel %vm137, %v1090, %v1102
  %v1106 = vpack.c.bf16 %v1105, %v1105
  %v1107 = vld [vmem:[%s2] sm:$0xff]
  %v1108 = vld [vmem:[%s2 + $0x8] sm:$0xff]
  %v1109 = vld [vmem:[%s2 + $0x10] sm:$0xff]
  %v1110 = vld [vmem:[%s2 + $0x18] sm:$0xff]
  %v1111 = vld [vmem:[%s2 + $0x20] sm:$0xff]
  %v1112 = vld [vmem:[%s2 + $0x28] sm:$0xff]
  %v1113 = vld [vmem:[%s2 + $0x30] sm:$0xff]
  %v1114 = vld [vmem:[%s2 + $0x38] sm:$0xff]
  %v1123 = vunpack.c.l.b16 %v1107
  %v1124 = vunpack.c.h.b16 %v1107
  %v1125 = vunpack.c.l.b16 %v1108
  %v1126 = vunpack.c.h.b16 %v1108
  %v1127 = vunpack.c.l.b16 %v1109
  %v1128 = vunpack.c.h.b16 %v1109
  %v1129 = vunpack.c.l.b16 %v1110
  %v1130 = vunpack.c.h.b16 %v1110
  %v1131 = vunpack.c.l.b16 %v1111
  %v1132 = vunpack.c.h.b16 %v1111
  %v1133 = vunpack.c.l.b16 %v1112
  %v1134 = vunpack.c.h.b16 %v1112
  %v1135 = vunpack.c.l.b16 %v1113
  %v1136 = vunpack.c.h.b16 %v1113
  %v1137 = vunpack.c.l.b16 %v1114
  %v1138 = vunpack.c.h.b16 %v1114
  %v1139 = vpack.c.b16 %v1125, %v1123
  %v1140 = vpack.c.b16 %v1126, %v1124
  %v1141 = vpack.c.b16 %v1129, %v1127
  %v1142 = vpack.c.b16 %v1130, %v1128
  %v1143 = vpack.c.b16 %v1133, %v1131
  %v1144 = vpack.c.b16 %v1134, %v1132
  %v1145 = vpack.c.b16 %v1137, %v1135
  %v1146 = vpack.c.b16 %v1138, %v1136
  %v1156 = vsel %vm288, %v1106, 0
  %1158 = vmatprep.subr.bf16.mxu0 0
  %1159 = vmatpush1.bf16.msra.mxu0 0
  %1160 = vmatprep.subr.bf16.mxu0 0
  %1161 = vmatpush1.bf16.msra.mxu0 0
  %1162 = vmatprep.subr.bf16.mxu0 0
  %1163 = vmatpush1.bf16.msra.mxu0 0
  %1164 = vmatprep.subr.bf16.mxu0 0
  %1165 = vmatpush1.bf16.msra.mxu0 0
  %1166 = vmatprep.subr.bf16.mxu0 %v1146
  %1167 = vmatpush1.bf16.msra.mxu0 %v1145
  %1168 = vmatprep.subr.bf16.mxu0 %v1144
  %1169 = vmatpush1.bf16.msra.mxu0 %v1143
  %1170 = vmatprep.subr.bf16.mxu0 %v1142
  %1171 = vmatpush1.bf16.msra.mxu0 %v1141
  %1172 = vmatprep.subr.bf16.mxu0 %v1140
  %1173 = vmatpush1.bf16.msra.mxu0 %v1139
  %1174 = vmatprep.subr.bf16.mxu0 0
  %1175 = vmatpush2.bf16.msra.mxu0 0
  %1176 = vmatprep.subr.bf16.mxu0 0
  %1177 = vmatpush2.bf16.msra.mxu0 0
  %1178 = vmatprep.subr.bf16.mxu0 0
  %1179 = vmatpush2.bf16.msra.mxu0 0
  %1180 = vmatprep.subr.bf16.mxu0 0
  %1181 = vmatpush2.bf16.msra.mxu0 0
  %1182 = vmatprep.subr.bf16.mxu0 0
  %1183 = vmatpush2.bf16.msra.mxu0 0
  %1184 = vmatprep.subr.bf16.mxu0 0
  %1185 = vmatpush2.bf16.msra.mxu0 0
  %1186 = vmatprep.subr.bf16.mxu0 0
  %1187 = vmatpush2.bf16.msra.mxu0 0
  %1188 = vmatprep.subr.bf16.mxu0 0
  %1189 = vmatpush2.bf16.msra.mxu0 0
  %1190 = vmatprep.mubr.bf16.mxu0 0
  %1191 = vmatmul.mubr.bf16.gmra.mxu0 %v1156
  %v1192 = vpop.f32.mrf.mxu0
  %v1193 = vadd.f32 0.0, %v1192
  %v1194 = vpop.f32.mrf.mxu0
  %v1195 = vadd.f32 0.0, %v1194
  %v1196 = vpop.f32.mrf.mxu0
  %v1197 = vpop.f32.mrf.mxu0
  %1198 = vdwg.mxu0
  %v1199 = vld [vmem:[%s684] sm:$0x3]
  %v1200 = vadd.f32 %v1199, %v1193
  %v1201 = vld [vmem:[%s681 + $0x2] sm:$0x3]
  %v1202 = vadd.f32 %v1201, %v1195
  %v1203 = vxor.u32 %v1200, 2147483648
  %v1204 = vmul.f32 %v1203, 1.442695
  %v1205 = vpow.pop %v1204
  %v1206 = vadd.f32 %v1205, 1.0
  %v1207 = vrcp.pop %v1206
  %v1208 = vmul.f32 1.0, %v1207
  %v1209 = vtanh.pop %v1200
  %v1210 = vmul.f32 %v1208, %v1050
  %1212 = vrot.lane.b32.xlu0 %v1209, 32
  %v1213 = vpop.permute.xlu0 %1212
  %v1215 = vmul.f32 %v1208, %v1213
  %1217 = vrot.lane.b32.xlu0 %v1215, 32
  %v1218 = vpop.permute.xlu0 %1217
  %v1220 = vadd.f32 %v1210, %v1218
  %v1221 = vtanh.pop %v1220
  %1223 = vrot.lane.b32.xlu0 %v1221, 32
  %v1224 = vpop.permute.xlu0 %1223
  %v1226 = vmul.f32 %v1208, %v1224
  %v1227 = vxor.u32 %v1202, 2147483648
  %v1228 = vmul.f32 %v1227, 1.442695
  %v1229 = vpow.pop %v1228
  %v1230 = vadd.f32 %v1229, 1.0
  %v1231 = vrcp.pop %v1230
  %v1232 = vmul.f32 1.0, %v1231
  %v1233 = vtanh.pop %v1202
  %v1234 = vmul.f32 %v1232, %v1074
  %1236 = vrot.lane.b32.xlu0 %v1233, 32
  %v1237 = vpop.permute.xlu0 %1236
  %v1239 = vmul.f32 %v1232, %v1237
  %1241 = vrot.lane.b32.xlu0 %v1239, 32
  %v1242 = vpop.permute.xlu0 %1241
  %v1244 = vadd.f32 %v1234, %v1242
  %v1245 = vtanh.pop %v1244
  %1247 = vrot.lane.b32.xlu0 %v1245, 32
  %v1248 = vpop.permute.xlu0 %1247
  %v1250 = vmul.f32 %v1232, %v1248
  %v1253 = vunpack.c.l.s4 1983009808
  %v1254 = vunpack.c.0.s8 %v1253
  %v1255 = vlaneseq
  %v1256 = vshrl.u32 %v1255, 7
  %v1257 = vsub.s32 %v1254, %v1256
  %v1258 = vrot.slane %v1226, %v1257
  %1259 = vrot.lane.b32.xlu0 %v1258, 64
  %v1260 = vpop.permute.xlu0 %1259
  %1262 = vst.msk [vmem:[%s759] sm:$0x3] %vm397, %v1260
  %v1265 = vunpack.c.l.s4 1983009808
  %v1266 = vunpack.c.0.s8 %v1265
  %v1267 = vlaneseq
  %v1268 = vshrl.u32 %v1267, 7
  %v1269 = vsub.s32 %v1266, %v1268
  %v1270 = vrot.slane %v1250, %v1269
  %1271 = vrot.lane.b32.xlu0 %v1270, 96
  %v1272 = vpop.permute.xlu0 %1271
  %1274 = vst.msk [vmem:[%s746] sm:$0x3] %vm411, %v1272
  %v1275 = vsel %vm137, %v1260, %v1272
  %v1276 = vpack.c.bf16 %v1275, %v1275
  %v1277 = vld [vmem:[%s2] sm:$0xff]
  %v1278 = vld [vmem:[%s2 + $0x8] sm:$0xff]
  %v1279 = vld [vmem:[%s2 + $0x10] sm:$0xff]
  %v1280 = vld [vmem:[%s2 + $0x18] sm:$0xff]
  %v1281 = vld [vmem:[%s2 + $0x20] sm:$0xff]
  %v1282 = vld [vmem:[%s2 + $0x28] sm:$0xff]
  %v1283 = vld [vmem:[%s2 + $0x30] sm:$0xff]
  %v1284 = vld [vmem:[%s2 + $0x38] sm:$0xff]
  %v1293 = vunpack.c.l.b16 %v1277
  %v1294 = vunpack.c.h.b16 %v1277
  %v1295 = vunpack.c.l.b16 %v1278
  %v1296 = vunpack.c.h.b16 %v1278
  %v1297 = vunpack.c.l.b16 %v1279
  %v1298 = vunpack.c.h.b16 %v1279
  %v1299 = vunpack.c.l.b16 %v1280
  %v1300 = vunpack.c.h.b16 %v1280
  %v1301 = vunpack.c.l.b16 %v1281
  %v1302 = vunpack.c.h.b16 %v1281
  %v1303 = vunpack.c.l.b16 %v1282
  %v1304 = vunpack.c.h.b16 %v1282
  %v1305 = vunpack.c.l.b16 %v1283
  %v1306 = vunpack.c.h.b16 %v1283
  %v1307 = vunpack.c.l.b16 %v1284
  %v1308 = vunpack.c.h.b16 %v1284
  %v1309 = vpack.c.b16 %v1295, %v1293
  %v1310 = vpack.c.b16 %v1296, %v1294
  %v1311 = vpack.c.b16 %v1299, %v1297
  %v1312 = vpack.c.b16 %v1300, %v1298
  %v1313 = vpack.c.b16 %v1303, %v1301
  %v1314 = vpack.c.b16 %v1304, %v1302
  %v1315 = vpack.c.b16 %v1307, %v1305
  %v1316 = vpack.c.b16 %v1308, %v1306
  %v1326 = vsel %vm288, %v1276, 0
  %1328 = vmatprep.subr.bf16.mxu0 0
  %1329 = vmatpush1.bf16.msra.mxu0 0
  %1330 = vmatprep.subr.bf16.mxu0 0
  %1331 = vmatpush1.bf16.msra.mxu0 0
  %1332 = vmatprep.subr.bf16.mxu0 0
  %1333 = vmatpush1.bf16.msra.mxu0 0
  %1334 = vmatprep.subr.bf16.mxu0 0
  %1335 = vmatpush1.bf16.msra.mxu0 0
  %1336 = vmatprep.subr.bf16.mxu0 %v1316
  %1337 = vmatpush1.bf16.msra.mxu0 %v1315
  %1338 = vmatprep.subr.bf16.mxu0 %v1314
  %1339 = vmatpush1.bf16.msra.mxu0 %v1313
  %1340 = vmatprep.subr.bf16.mxu0 %v1312
  %1341 = vmatpush1.bf16.msra.mxu0 %v1311
  %1342 = vmatprep.subr.bf16.mxu0 %v1310
  %1343 = vmatpush1.bf16.msra.mxu0 %v1309
  %1344 = vmatprep.subr.bf16.mxu0 0
  %1345 = vmatpush2.bf16.msra.mxu0 0
  %1346 = vmatprep.subr.bf16.mxu0 0
  %1347 = vmatpush2.bf16.msra.mxu0 0
  %1348 = vmatprep.subr.bf16.mxu0 0
  %1349 = vmatpush2.bf16.msra.mxu0 0
  %1350 = vmatprep.subr.bf16.mxu0 0
  %1351 = vmatpush2.bf16.msra.mxu0 0
  %1352 = vmatprep.subr.bf16.mxu0 0
  %1353 = vmatpush2.bf16.msra.mxu0 0
  %1354 = vmatprep.subr.bf16.mxu0 0
  %1355 = vmatpush2.bf16.msra.mxu0 0
  %1356 = vmatprep.subr.bf16.mxu0 0
  %1357 = vmatpush2.bf16.msra.mxu0 0
  %1358 = vmatprep.subr.bf16.mxu0 0
  %1359 = vmatpush2.bf16.msra.mxu0 0
  %1360 = vmatprep.mubr.bf16.mxu0 0
  %1361 = vmatmul.mubr.bf16.gmra.mxu0 %v1326
  %v1362 = vpop.f32.mrf.mxu0
  %v1363 = vadd.f32 0.0, %v1362
  %v1364 = vpop.f32.mrf.mxu0
  %v1365 = vadd.f32 0.0, %v1364
  %v1366 = vpop.f32.mrf.mxu0
  %v1367 = vpop.f32.mrf.mxu0
  %1368 = vdwg.mxu0
  %v1369 = vld [vmem:[%s510] sm:$0x3]
  %v1370 = vadd.f32 %v1369, %v1363
  %v1371 = vld [vmem:[%s507 + $0x2] sm:$0x3]
  %v1372 = vadd.f32 %v1371, %v1365
  %v1373 = vxor.u32 %v1370, 2147483648
  %v1374 = vmul.f32 %v1373, 1.442695
  %v1375 = vpow.pop %v1374
  %v1376 = vadd.f32 %v1375, 1.0
  %v1377 = vrcp.pop %v1376
  %v1378 = vmul.f32 1.0, %v1377
  %v1379 = vtanh.pop %v1370
  %v1380 = vmul.f32 %v1378, %v1220
  %1382 = vrot.lane.b32.xlu0 %v1379, 32
  %v1383 = vpop.permute.xlu0 %1382
  %v1385 = vmul.f32 %v1378, %v1383
  %1387 = vrot.lane.b32.xlu0 %v1385, 32
  %v1388 = vpop.permute.xlu0 %1387
  %v1390 = vadd.f32 %v1380, %v1388
  %v1391 = vtanh.pop %v1390
  %1393 = vrot.lane.b32.xlu0 %v1391, 32
  %v1394 = vpop.permute.xlu0 %1393
  %v1396 = vmul.f32 %v1378, %v1394
  %v1397 = vxor.u32 %v1372, 2147483648
  %v1398 = vmul.f32 %v1397, 1.442695
  %v1399 = vpow.pop %v1398
  %v1400 = vadd.f32 %v1399, 1.0
  %v1401 = vrcp.pop %v1400
  %v1402 = vmul.f32 1.0, %v1401
  %v1403 = vtanh.pop %v1372
  %v1404 = vmul.f32 %v1402, %v1244
  %1406 = vrot.lane.b32.xlu0 %v1403, 32
  %v1407 = vpop.permute.xlu0 %1406
  %v1409 = vmul.f32 %v1402, %v1407
  %1411 = vrot.lane.b32.xlu0 %v1409, 32
  %v1412 = vpop.permute.xlu0 %1411
  %v1414 = vadd.f32 %v1404, %v1412
  %v1415 = vtanh.pop %v1414
  %1417 = vrot.lane.b32.xlu0 %v1415, 32
  %v1418 = vpop.permute.xlu0 %1417
  %v1420 = vmul.f32 %v1402, %v1418
  %v1423 = vunpack.c.l.s4 1983009808
  %v1424 = vunpack.c.0.s8 %v1423
  %v1425 = vlaneseq
  %v1426 = vshrl.u32 %v1425, 7
  %v1427 = vsub.s32 %v1424, %v1426
  %v1428 = vrot.slane %v1396, %v1427
  %1429 = vrot.lane.b32.xlu0 %v1428, 64
  %v1430 = vpop.permute.xlu0 %1429
  %1432 = vst.msk [vmem:[%s585] sm:$0x3] %vm397, %v1430
  %v1435 = vunpack.c.l.s4 1983009808
  %v1436 = vunpack.c.0.s8 %v1435
  %v1437 = vlaneseq
  %v1438 = vshrl.u32 %v1437, 7
  %v1439 = vsub.s32 %v1436, %v1438
  %v1440 = vrot.slane %v1420, %v1439
  %1441 = vrot.lane.b32.xlu0 %v1440, 96
  %v1442 = vpop.permute.xlu0 %1441
  %1444 = vst.msk [vmem:[%s572] sm:$0x3] %vm411, %v1442
  %v1445 = vsel %vm137, %v1430, %v1442
  %v1446 = vpack.c.bf16 %v1445, %v1445
  %v1447 = vld [vmem:[%s2] sm:$0xff]
  %v1448 = vld [vmem:[%s2 + $0x8] sm:$0xff]
  %v1449 = vld [vmem:[%s2 + $0x10] sm:$0xff]
  %v1450 = vld [vmem:[%s2 + $0x18] sm:$0xff]
  %v1451 = vld [vmem:[%s2 + $0x20] sm:$0xff]
  %v1452 = vld [vmem:[%s2 + $0x28] sm:$0xff]
  %v1453 = vld [vmem:[%s2 + $0x30] sm:$0xff]
  %v1454 = vld [vmem:[%s2 + $0x38] sm:$0xff]
  %v1463 = vunpack.c.l.b16 %v1447
  %v1464 = vunpack.c.h.b16 %v1447
  %v1465 = vunpack.c.l.b16 %v1448
  %v1466 = vunpack.c.h.b16 %v1448
  %v1467 = vunpack.c.l.b16 %v1449
  %v1468 = vunpack.c.h.b16 %v1449
  %v1469 = vunpack.c.l.b16 %v1450
  %v1470 = vunpack.c.h.b16 %v1450
  %v1471 = vunpack.c.l.b16 %v1451
  %v1472 = vunpack.c.h.b16 %v1451
  %v1473 = vunpack.c.l.b16 %v1452
  %v1474 = vunpack.c.h.b16 %v1452
  %v1475 = vunpack.c.l.b16 %v1453
  %v1476 = vunpack.c.h.b16 %v1453
  %v1477 = vunpack.c.l.b16 %v1454
  %v1478 = vunpack.c.h.b16 %v1454
  %v1479 = vpack.c.b16 %v1465, %v1463
  %v1480 = vpack.c.b16 %v1466, %v1464
  %v1481 = vpack.c.b16 %v1469, %v1467
  %v1482 = vpack.c.b16 %v1470, %v1468
  %v1483 = vpack.c.b16 %v1473, %v1471
  %v1484 = vpack.c.b16 %v1474, %v1472
  %v1485 = vpack.c.b16 %v1477, %v1475
  %v1486 = vpack.c.b16 %v1478, %v1476
  %v1496 = vsel %vm288, %v1446, 0
  %1498 = vmatprep.subr.bf16.mxu0 0
  %1499 = vmatpush1.bf16.msra.mxu0 0
  %1500 = vmatprep.subr.bf16.mxu0 0
  %1501 = vmatpush1.bf16.msra.mxu0 0
  %1502 = vmatprep.subr.bf16.mxu0 0
  %1503 = vmatpush1.bf16.msra.mxu0 0
  %1504 = vmatprep.subr.bf16.mxu0 0
  %1505 = vmatpush1.bf16.msra.mxu0 0
  %1506 = vmatprep.subr.bf16.mxu0 %v1486
  %1507 = vmatpush1.bf16.msra.mxu0 %v1485
  %1508 = vmatprep.subr.bf16.mxu0 %v1484
  %1509 = vmatpush1.bf16.msra.mxu0 %v1483
  %1510 = vmatprep.subr.bf16.mxu0 %v1482
  %1511 = vmatpush1.bf16.msra.mxu0 %v1481
  %1512 = vmatprep.subr.bf16.mxu0 %v1480
  %1513 = vmatpush1.bf16.msra.mxu0 %v1479
  %1514 = vmatprep.subr.bf16.mxu0 0
  %1515 = vmatpush2.bf16.msra.mxu0 0
  %1516 = vmatprep.subr.bf16.mxu0 0
  %1517 = vmatpush2.bf16.msra.mxu0 0
  %1518 = vmatprep.subr.bf16.mxu0 0
  %1519 = vmatpush2.bf16.msra.mxu0 0
  %1520 = vmatprep.subr.bf16.mxu0 0
  %1521 = vmatpush2.bf16.msra.mxu0 0
  %1522 = vmatprep.subr.bf16.mxu0 0
  %1523 = vmatpush2.bf16.msra.mxu0 0
  %1524 = vmatprep.subr.bf16.mxu0 0
  %1525 = vmatpush2.bf16.msra.mxu0 0
  %1526 = vmatprep.subr.bf16.mxu0 0
  %1527 = vmatpush2.bf16.msra.mxu0 0
  %1528 = vmatprep.subr.bf16.mxu0 0
  %1529 = vmatpush2.bf16.msra.mxu0 0
  %1530 = vmatprep.mubr.bf16.mxu0 0
  %1531 = vmatmul.mubr.bf16.gmra.mxu0 %v1496
  %v1532 = vpop.f32.mrf.mxu0
  %v1533 = vadd.f32 0.0, %v1532
  %v1534 = vpop.f32.mrf.mxu0
  %v1535 = vadd.f32 0.0, %v1534
  %v1536 = vpop.f32.mrf.mxu0
  %v1537 = vpop.f32.mrf.mxu0
  %1538 = vdwg.mxu0
  %v1539 = vld [vmem:[%s335] sm:$0x3]
  %v1540 = vadd.f32 %v1539, %v1533
  %v1541 = vld [vmem:[#allocation2 + $0x2] sm:$0x3]
  %v1542 = vadd.f32 %v1541, %v1535
  %v1543 = vxor.u32 %v1540, 2147483648
  %v1544 = vmul.f32 %v1543, 1.442695
  %v1545 = vpow.pop %v1544
  %v1546 = vadd.f32 %v1545, 1.0
  %v1547 = vrcp.pop %v1546
  %v1548 = vmul.f32 1.0, %v1547
  %v1549 = vtanh.pop %v1540
  %v1550 = vmul.f32 %v1548, %v1390
  %1552 = vrot.lane.b32.xlu0 %v1549, 32
  %v1553 = vpop.permute.xlu0 %1552
  %v1555 = vmul.f32 %v1548, %v1553
  %1557 = vrot.lane.b32.xlu0 %v1555, 32
  %v1558 = vpop.permute.xlu0 %1557
  %v1560 = vadd.f32 %v1550, %v1558
  %v1561 = vtanh.pop %v1560
  %1563 = vrot.lane.b32.xlu0 %v1561, 32
  %v1564 = vpop.permute.xlu0 %1563
  %v1566 = vmul.f32 %v1548, %v1564
  %v1567 = vxor.u32 %v1542, 2147483648
  %v1568 = vmul.f32 %v1567, 1.442695
  %v1569 = vpow.pop %v1568
  %v1570 = vadd.f32 %v1569, 1.0
  %v1571 = vrcp.pop %v1570
  %v1572 = vmul.f32 1.0, %v1571
  %v1573 = vtanh.pop %v1542
  %v1574 = vmul.f32 %v1572, %v1414
  %1576 = vrot.lane.b32.xlu0 %v1573, 32
  %v1577 = vpop.permute.xlu0 %1576
  %v1579 = vmul.f32 %v1572, %v1577
  %1581 = vrot.lane.b32.xlu0 %v1579, 32
  %v1582 = vpop.permute.xlu0 %1581
  %v1584 = vadd.f32 %v1574, %v1582
  %v1585 = vtanh.pop %v1584
  %1587 = vrot.lane.b32.xlu0 %v1585, 32
  %v1588 = vpop.permute.xlu0 %1587
  %v1590 = vmul.f32 %v1572, %v1588
  %v1593 = vunpack.c.l.s4 1983009808
  %v1594 = vunpack.c.0.s8 %v1593
  %v1595 = vlaneseq
  %v1596 = vshrl.u32 %v1595, 7
  %v1597 = vsub.s32 %v1594, %v1596
  %v1598 = vrot.slane %v1566, %v1597
  %1599 = vrot.lane.b32.xlu0 %v1598, 64
  %v1600 = vpop.permute.xlu0 %1599
  %1602 = vst.msk [vmem:[%s410] sm:$0x3] %vm397, %v1600
  %v1605 = vunpack.c.l.s4 1983009808
  %v1606 = vunpack.c.0.s8 %v1605
  %v1607 = vlaneseq
  %v1608 = vshrl.u32 %v1607, 7
  %v1609 = vsub.s32 %v1606, %v1608
  %v1610 = vrot.slane %v1590, %v1609
  %1611 = vrot.lane.b32.xlu0 %v1610, 96
  %v1612 = vpop.permute.xlu0 %1611
  %1614 = vst.msk [vmem:[%s4] sm:$0x3] %vm411, %v1612
  // Predicated region
  $region18: #{bilstm_forward.1} parent=0 // pred_check
    _
  $region19: #{bilstm_forward.1} parent=0 // pred_check_branch
    %1616 = sbr.rel (0) target = $region21
  $region20: #{bilstm_forward.1} parent=0 // pred_region
    _
  $region21: #{bilstm_forward.1} parent=0 // pred_fallthru
    _
  // Predicated region
  $region22: #{bilstm_forward.1} parent=0 // pred_check
    _
  $region23: #{bilstm_forward.1} parent=0 // pred_check_branch
    %1618 = sbr.rel (0) target = $region25
  $region24: #{bilstm_forward.1} parent=0 // pred_region
    _
  $region25: #{bilstm_forward.1} parent=0 // pred_fallthru
    _

</llo_original>
